<compile_context>
chip_gen: v7x
topology: tpu7x:2x2x1
jax: 0.10.0
libtpu: 0.0.40
codegen_flags: <defaults>
</compile_context>

<pallas_src>
import math
import functools

import jax
import jax.numpy as jnp
from jax import lax
from jax.experimental import pallas as pl
from jax.experimental.pallas import tpu as pltpu


def _bert_cross_attn_kernel(q_ref, kv_ref,
                            wq_ref, bq_ref, wkv_ref, bkv_ref,
                            wo_ref, bo_ref, gamma_ref, beta_ref,
                            out_ref, *rest,
                            num_heads, head_size, ln_eps, emit_att):
    if emit_att:
        att_ref, k_scr, v_scr, ctx_scr = rest
    else:
        att_ref = None
        k_scr, v_scr, ctx_scr = rest

    bf16 = jnp.bfloat16
    D = q_ref.shape[-1]
    q = q_ref[0]                       # (TQ, D) f32 (kept f32 for residual / LN)
    q_bf = q.astype(bf16)

    # K/V projections only once per batch (first Lq tile); cached in VMEM.
    # Single fused matmul against the concatenated [Wk|Wv] weight.
    @pl.when(pl.program_id(1) == 0)
    def _():
        kv = kv_ref[0]                 # (L, D) bf16
        KV = jnp.dot(kv, wkv_ref[...],
                     preferred_element_type=jnp.float32) + bkv_ref[...]
        k_scr[...] = KV[:, :D].astype(bf16)
        v_scr[...] = KV[:, D:].astype(bf16)

    # Q projection; 1/sqrt(head_size) is already folded into wq/bq host-side.
    Q = jnp.dot(q_bf, wq_ref[...],
                preferred_element_type=jnp.float32) + bq_ref[...]
    Qb = Q.astype(bf16)
    Kb = k_scr[...]                    # (L, D) bf16, cached across Lq tiles
    Vb = v_scr[...]                    # (L, D) bf16

    # Per-head attention; per-head contexts are assembled into ctx_scr so the
    # output projection runs as a single full-depth matmul afterwards.
    for h in range(num_heads):
        lo = h * head_size
        hi = lo + head_size
        Qh = Qb[:, lo:hi]              # (TQ, hd) bf16
        Kh = Kb[:, lo:hi]              # (L,  hd) bf16
        Vh = Vb[:, lo:hi]              # (L,  hd) bf16

        # Contract last dims of both operands -> no explicit K transpose.
        # TODO(synk): verify via bundle dump that Mosaic does not materialize
        # a per-head K^T; if it does, cache K pre-transposed at qi==0.
        scores = lax.dot_general(
            Qh, Kh, (((1,), (1,)), ((), ())),
            preferred_element_type=jnp.float32)            # (TQ, L)

        m = jnp.max(scores, axis=-1, keepdims=True)
        e = jnp.exp(scores - m)
        denom = jnp.sum(e, axis=-1, keepdims=True)
        probs_bf = (e * pl.reciprocal(denom, approx=True)).astype(bf16)

        if emit_att:
            att_ref[0, h] = probs_bf                       # att_map (pre-dropout)
        # attention dropout: identity in eval mode

        ctx_h = jnp.dot(probs_bf, Vh,
                        preferred_element_type=jnp.float32)  # (TQ, hd)
        ctx_scr[:, lo:hi] = ctx_h.astype(bf16)

    # BertSelfOutput: one full-depth Wo matmul, bias, residual, LayerNorm.
    hidden = jnp.dot(ctx_scr[...], wo_ref[...],
                     preferred_element_type=jnp.float32)     # (TQ, D)
    x = hidden + bo_ref[...] + q

    # One-pass LayerNorm stats in f32; rsqrt on the EUP; variance clamped >= 0.
    d_inv = 1.0 / x.shape[-1]
    sx = jnp.sum(x, axis=-1, keepdims=True)
    sxx = jnp.sum(x * x, axis=-1, keepdims=True)
    u = sx * d_inv
    var = jnp.maximum(sxx * d_inv - u * u, 0.0)
    xn = (x - u) * lax.rsqrt(var + ln_eps)
    out_ref[0] = (gamma_ref[...] * xn + beta_ref[...]).astype(out_ref.dtype)


def bert_attention_cross(q, kv, params, *, num_heads, ln_eps=1e-12,
                         block_q=None, with_att_map=True, out_dtype=None):
    """q: (N, Lq, D), kv: (N, L, D).

    Returns (attention_output (N, Lq, D), att_map (N, H, Lq, L) bf16 or None).
    """
    N, Lq, D = q.shape
    _, L, _ = kv.shape
    head_size = D // num_heads
    if out_dtype is None:
        out_dtype = q.dtype

    if block_q is None:
        # 128 keeps the VMEM working set comfortable on v7x (64 MiB).
        block_q = 128 if (Lq % 128 == 0) else Lq
    assert Lq % block_q == 0, "Lq must be divisible by block_q"
    n_q = Lq // block_q

    bf16 = jnp.bfloat16
    scale = 1.0 / math.sqrt(head_size)
    wq = (params["wq"] * scale).astype(bf16)            # fold 1/sqrt(hd) into Wq
    bq = params["bq"] * scale                           # ... and into bq
    wkv = jnp.concatenate([params["wk"], params["wv"]], axis=1).astype(bf16)
    bkv = jnp.concatenate([params["bk"], params["bv"]], axis=1)
    wo = params["wo"].astype(bf16)
    kv_bf = kv.astype(bf16)

    kernel = functools.partial(
        _bert_cross_attn_kernel,
        num_heads=num_heads, head_size=head_size, ln_eps=ln_eps,
        emit_att=with_att_map)

    const2d = lambda shape: pl.BlockSpec(shape, lambda b, qi: (0, 0))

    out_shapes = [jax.ShapeDtypeStruct((N, Lq, D), out_dtype)]
    out_specs = [pl.BlockSpec((1, block_q, D), lambda b, qi: (b, qi, 0))]
    if with_att_map:
        out_shapes.append(
            jax.ShapeDtypeStruct((N, num_heads, Lq, L), jnp.bfloat16))
        out_specs.append(
            pl.BlockSpec((1, num_heads, block_q, L), lambda b, qi: (b, 0, qi, 0)))

    result = pl.pallas_call(
        kernel,
        out_shape=tuple(out_shapes),
        grid_spec=pltpu.PrefetchScalarGridSpec(
            num_scalar_prefetch=0,
            grid=(N, n_q),
            in_specs=[
                pl.BlockSpec((1, block_q, D), lambda b, qi: (b, qi, 0)),  # q tile
                pl.BlockSpec((1, L, D), lambda b, qi: (b, 0, 0)),         # kv
                const2d((D, D)), const2d((1, D)),            # Wq*scale, bq*scale
                const2d((D, 2 * D)), const2d((1, 2 * D)),    # [Wk|Wv], [bk|bv]
                const2d((D, D)), const2d((1, D)),            # Wo, bo
                const2d((1, D)), const2d((1, D)),            # LN gamma, beta
            ],
            out_specs=tuple(out_specs),
            scratch_shapes=[
                pltpu.VMEM((L, D), bf16),         # K cache, persists across Lq tiles
                pltpu.VMEM((L, D), bf16),         # V cache
                pltpu.VMEM((block_q, D), bf16),   # assembled per-head context
            ],
        ),
        compiler_params=pltpu.CompilerParams(
            dimension_semantics=("parallel", "arbitrary"),
            vmem_limit_bytes=48 * 1024 * 1024),
    )(q, kv_bf, wq, bq, wkv, bkv, wo,
      params["bo"], params["gamma"], params["beta"])

    if with_att_map:
        return result
    return result[0], None


def init_params(key, hidden_size):
    """Deterministic synthetic parameters. Linear weights stored as (D_in, D_out)."""
    D = hidden_size
    ks = jax.random.split(key, 8)
    scale = 1.0 / math.sqrt(D)
    return {
        "wq": jax.random.normal(ks[0], (D, D), jnp.float32) * scale,
        "bq": jax.random.normal(ks[1], (1, D), jnp.float32) * 0.02,
        "wk": jax.random.normal(ks[2], (D, D), jnp.float32) * scale,
        "bk": jax.random.normal(ks[3], (1, D), jnp.float32) * 0.02,
        "wv": jax.random.normal(ks[4], (D, D), jnp.float32) * scale,
        "bv": jax.random.normal(ks[5], (1, D), jnp.float32) * 0.02,
        "wo": jax.random.normal(ks[6], (D, D), jnp.float32) * scale,
        "bo": jax.random.normal(ks[7], (1, D), jnp.float32) * 0.02,
        "gamma": jnp.ones((1, D), jnp.float32),
        "beta": jnp.zeros((1, D), jnp.float32),
    }


def reference(q, kv, params, *, num_heads, ln_eps=1e-12):
    """Pure-JAX reference mirroring the PyTorch forward (eval mode) with the
    same bf16-operand / f32-accumulate matmul precision as the kernel."""
    bf16 = jnp.bfloat16
    f32 = jnp.float32
    N, Lq, D = q.shape
    L = kv.shape[1]
    hd = D // num_heads
    qb = q.astype(bf16)
    kvb = kv.astype(bf16)
    Q = jnp.dot(qb, params["wq"].astype(bf16), preferred_element_type=f32) + params["bq"]
    K = jnp.dot(kvb, params["wk"].astype(bf16), preferred_element_type=f32) + params["bk"]
    V = jnp.dot(kvb, params["wv"].astype(bf16), preferred_element_type=f32) + params["bv"]
    Qh = (Q / math.sqrt(hd)).reshape(N, Lq, num_heads, hd).transpose(0, 2, 1, 3).astype(bf16)
    Kh = K.reshape(N, L, num_heads, hd).transpose(0, 2, 1, 3).astype(bf16)
    Vh = V.reshape(N, L, num_heads, hd).transpose(0, 2, 1, 3).astype(bf16)
    scores = jnp.einsum("nhqd,nhkd->nhqk", Qh, Kh, preferred_element_type=f32)
    probs = jax.nn.softmax(scores, axis=-1)
    ctx = jnp.einsum("nhqk,nhkd->nhqd", probs.astype(bf16), Vh, preferred_element_type=f32)
    ctx = ctx.transpose(0, 2, 1, 3).reshape(N, Lq, D)
    hid = jnp.dot(ctx.astype(bf16), params["wo"].astype(bf16),
                  preferred_element_type=f32) + params["bo"]
    x = hid + q
    u = x.mean(-1, keepdims=True)
    s = ((x - u) ** 2).mean(-1, keepdims=True)
    xn = (x - u) / jnp.sqrt(s + ln_eps)
    return params["gamma"] * xn + params["beta"], probs


if __name__ == "__main__":
    key = jax.random.PRNGKey(0)
    kq, kkv, kp, kq2 = jax.random.split(key, 4)

    # Config 1: single Lq tile (n_q == 1).
    N, Lq, L, D, H = 2, 8, 8, 32, 4
    q = jax.random.normal(kq, (N, Lq, D), jnp.float32)
    kv = jax.random.normal(kkv, (N, L, D), jnp.float32)
    params = init_params(kp, D)

    out, att_map = bert_attention_cross(q, kv, params, num_heads=H)
    out = jax.block_until_ready(out)
    att_map = jax.block_until_ready(att_map)
    ref_out, ref_att = reference(q, kv, params, num_heads=H)
    assert out.shape == (N, Lq, D)
    assert att_map.shape == (N, H, Lq, L)
    assert jnp.allclose(out, ref_out, atol=1e-2, rtol=1e-2)
    assert jnp.allclose(att_map.astype(jnp.float32), ref_att, atol=1e-2, rtol=1e-2)

    # Config 2: two Lq tiles -> exercises the cached-K/V (qi > 0) path,
    # plus the att-map-disabled variant.
    Lq2 = 16
    q2 = jax.random.normal(kq2, (N, Lq2, D), jnp.float32)
    out2, att2 = bert_attention_cross(q2, kv, params, num_heads=H, block_q=8)
    out2 = jax.block_until_ready(out2)
    ref_out2, ref_att2 = reference(q2, kv, params, num_heads=H)
    assert out2.shape == (N, Lq2, D)
    assert jnp.allclose(out2, ref_out2, atol=1e-2, rtol=1e-2)
    assert jnp.allclose(att2.astype(jnp.float32), ref_att2, atol=1e-2, rtol=1e-2)

    out3, att3 = bert_attention_cross(q2, kv, params, num_heads=H, block_q=8,
                                      with_att_map=False)
    out3 = jax.block_until_ready(out3)
    assert att3 is None
    assert jnp.allclose(out3, ref_out2, atol=1e-2, rtol=1e-2)

    print("KERNEL_OK")
</pallas_src>

<mosaic_0001>
module attributes {stable_mosaic.version = 11 : i64} {
  func.func @_bert_cross_attn_kernel(%arg0: i32, %arg1: i32, %arg2: memref<1x8x32xf32, #tpu.memory_space<vmem>>, %arg3: memref<1x8x32xbf16, #tpu.memory_space<vmem>>, %arg4: memref<32x32xbf16, #tpu.memory_space<vmem>>, %arg5: memref<1x32xf32, #tpu.memory_space<vmem>>, %arg6: memref<32x64xbf16, #tpu.memory_space<vmem>>, %arg7: memref<1x64xf32, #tpu.memory_space<vmem>>, %arg8: memref<32x32xbf16, #tpu.memory_space<vmem>>, %arg9: memref<1x32xf32, #tpu.memory_space<vmem>>, %arg10: memref<1x32xf32, #tpu.memory_space<vmem>>, %arg11: memref<1x32xf32, #tpu.memory_space<vmem>>, %arg12: memref<1x8x32xf32, #tpu.memory_space<vmem>>, %arg13: memref<1x4x8x8xbf16, #tpu.memory_space<vmem>>, %arg14: memref<8x32xbf16, #tpu.memory_space<vmem>>, %arg15: memref<8x32xbf16, #tpu.memory_space<vmem>>, %arg16: memref<8x32xbf16, #tpu.memory_space<vmem>>) attributes {dimension_semantics = [#tpu.dimension_semantics<parallel>, #tpu.dimension_semantics<arbitrary>], iteration_bounds = array<i64: 2, 1>, scalar_prefetch = 0 : i64, scratch_operands = 3 : i64, tpu.core_type = #tpu.core_type<tc>, window_params = [{transform_indices = @transform_0, window_bounds = array<i64: 1, 8, 32>}, {transform_indices = @transform_1, window_bounds = array<i64: 1, 8, 32>}, {pipeline_mode = #tpu.pipeline_mode<synchronous>, transform_indices = @transform_2, window_bounds = array<i64: 32, 32>}, {pipeline_mode = #tpu.pipeline_mode<synchronous>, transform_indices = @transform_3, window_bounds = array<i64: 1, 32>}, {pipeline_mode = #tpu.pipeline_mode<synchronous>, transform_indices = @transform_4, window_bounds = array<i64: 32, 64>}, {pipeline_mode = #tpu.pipeline_mode<synchronous>, transform_indices = @transform_5, window_bounds = array<i64: 1, 64>}, {pipeline_mode = #tpu.pipeline_mode<synchronous>, transform_indices = @transform_6, window_bounds = array<i64: 32, 32>}, {pipeline_mode = #tpu.pipeline_mode<synchronous>, transform_indices = @transform_7, window_bounds = array<i64: 1, 32>}, {pipeline_mode = #tpu.pipeline_mode<synchronous>, transform_indices = @transform_8, window_bounds = array<i64: 1, 32>}, {pipeline_mode = #tpu.pipeline_mode<synchronous>, transform_indices = @transform_9, window_bounds = array<i64: 1, 32>}, {transform_indices = @transform_10, window_bounds = array<i64: 1, 8, 32>}, {transform_indices = @transform_11, window_bounds = array<i64: 1, 4, 8, 8>}]} {
    %c0 = arith.constant 0 : index
    %c0_0 = arith.constant 0 : index
    %c0_1 = arith.constant 0 : index
    %0 = vector.load %arg2[%c0, %c0_0, %c0_1] : memref<1x8x32xf32, #tpu.memory_space<vmem>>, vector<1x8x32xf32>
    %1 = vector.shape_cast %0 : vector<1x8x32xf32> to vector<8x32xf32>
    %2 = arith.truncf %1 : vector<8x32xf32> to vector<8x32xbf16>
    %c0_i32 = arith.constant 0 : i32
    %3 = arith.cmpi eq, %arg1, %c0_i32 : i32
    %4 = arith.extui %3 : i1 to i32
    %c0_i32_2 = arith.constant 0 : i32
    %5 = arith.cmpi ne, %4, %c0_i32_2 : i32
    scf.if %5 {
      %c0_65 = arith.constant 0 : index
      %c0_66 = arith.constant 0 : index
      %c0_67 = arith.constant 0 : index
      %134 = vector.load %arg3[%c0_65, %c0_66, %c0_67] : memref<1x8x32xbf16, #tpu.memory_space<vmem>>, vector<1x8x32xbf16>
      %135 = vector.shape_cast %134 : vector<1x8x32xbf16> to vector<8x32xbf16>
      %c0_68 = arith.constant 0 : index
      %c0_69 = arith.constant 0 : index
      %136 = vector.load %arg6[%c0_68, %c0_69] : memref<32x64xbf16, #tpu.memory_space<vmem>>, vector<32x64xbf16>
      %cst_70 = arith.constant dense<0.000000e+00> : vector<8x64xf32>
      %137 = tpu.matmul %135, %136, %cst_70 {dimension_numbers = #tpu.dot_dimension_numbers<[1], [0], [0], [1], [0, 0, 1, 1], [], []>} : vector<8x32xbf16>, vector<32x64xbf16>, vector<8x64xf32> -> vector<8x64xf32>
      %c0_71 = arith.constant 0 : index
      %c0_72 = arith.constant 0 : index
      %138 = vector.load %arg7[%c0_71, %c0_72] : memref<1x64xf32, #tpu.memory_space<vmem>>, vector<1x64xf32>
      %139 = vector.broadcast %138 : vector<1x64xf32> to vector<8x64xf32>
      %140 = arith.addf %137, %139 : vector<8x64xf32>
      %141 = vector.extract_strided_slice %140 {offsets = [0, 0], sizes = [8, 32], strides = [1, 1]} : vector<8x64xf32> to vector<8x32xf32>
      %142 = arith.truncf %141 : vector<8x32xf32> to vector<8x32xbf16>
      %c0_73 = arith.constant 0 : index
      %c0_74 = arith.constant 0 : index
      %143 = vector.load %arg14[%c0_73, %c0_74] : memref<8x32xbf16, #tpu.memory_space<vmem>>, vector<8x32xbf16>
      tpu.vector_store %arg14[%c0_73, %c0_74], %142 {strides = array<i32>} : memref<8x32xbf16, #tpu.memory_space<vmem>>, vector<8x32xbf16>,
      %144 = vector.extract_strided_slice %140 {offsets = [0, 32], sizes = [8, 32], strides = [1, 1]} : vector<8x64xf32> to vector<8x32xf32>
      %145 = arith.truncf %144 : vector<8x32xf32> to vector<8x32xbf16>
      %c0_75 = arith.constant 0 : index
      %c0_76 = arith.constant 0 : index
      %146 = vector.load %arg15[%c0_75, %c0_76] : memref<8x32xbf16, #tpu.memory_space<vmem>>, vector<8x32xbf16>
      tpu.vector_store %arg15[%c0_75, %c0_76], %145 {strides = array<i32>} : memref<8x32xbf16, #tpu.memory_space<vmem>>, vector<8x32xbf16>,
    } else {
    }
    %c0_3 = arith.constant 0 : index
    %c0_4 = arith.constant 0 : index
    %6 = vector.load %arg4[%c0_3, %c0_4] : memref<32x32xbf16, #tpu.memory_space<vmem>>, vector<32x32xbf16>
    %cst = arith.constant dense<0.000000e+00> : vector<8x32xf32>
    %7 = tpu.matmul %2, %6, %cst {dimension_numbers = #tpu.dot_dimension_numbers<[1], [0], [0], [1], [0, 0, 1, 1], [], []>} : vector<8x32xbf16>, vector<32x32xbf16>, vector<8x32xf32> -> vector<8x32xf32>
    %c0_5 = arith.constant 0 : index
    %c0_6 = arith.constant 0 : index
    %8 = vector.load %arg5[%c0_5, %c0_6] : memref<1x32xf32, #tpu.memory_space<vmem>>, vector<1x32xf32>
    %9 = vector.broadcast %8 : vector<1x32xf32> to vector<8x32xf32>
    %10 = arith.addf %7, %9 : vector<8x32xf32>
    %11 = arith.truncf %10 : vector<8x32xf32> to vector<8x32xbf16>
    %c0_7 = arith.constant 0 : index
    %c0_8 = arith.constant 0 : index
    %12 = vector.load %arg14[%c0_7, %c0_8] : memref<8x32xbf16, #tpu.memory_space<vmem>>, vector<8x32xbf16>
    %c0_9 = arith.constant 0 : index
    %c0_10 = arith.constant 0 : index
    %13 = vector.load %arg15[%c0_9, %c0_10] : memref<8x32xbf16, #tpu.memory_space<vmem>>, vector<8x32xbf16>
    %14 = vector.extract_strided_slice %11 {offsets = [0, 0], sizes = [8, 8], strides = [1, 1]} : vector<8x32xbf16> to vector<8x8xbf16>
    %15 = vector.extract_strided_slice %12 {offsets = [0, 0], sizes = [8, 8], strides = [1, 1]} : vector<8x32xbf16> to vector<8x8xbf16>
    %16 = vector.extract_strided_slice %13 {offsets = [0, 0], sizes = [8, 8], strides = [1, 1]} : vector<8x32xbf16> to vector<8x8xbf16>
    %cst_11 = arith.constant dense<0.000000e+00> : vector<8x8xf32>
    %17 = tpu.matmul %14, %15, %cst_11 {dimension_numbers = #tpu.dot_dimension_numbers<[1], [1], [0], [0], [0, 0, 1, 0], [], []>} : vector<8x8xbf16>, vector<8x8xbf16>, vector<8x8xf32> -> vector<8x8xf32>
    %cst_12 = arith.constant dense<0xFF800000> : vector<8xf32>
    %18 = vector.multi_reduction <maximumf>, %17, %cst_12 [1] : vector<8x8xf32> to vector<8xf32>
    %19 = vector.shape_cast %18 : vector<8xf32> to vector<8x1xf32>
    %20 = vector.broadcast %19 : vector<8x1xf32> to vector<8x8xf32>
    %21 = arith.subf %17, %20 : vector<8x8xf32>
    %22 = math.exp %21 : vector<8x8xf32>
    %cst_13 = arith.constant dense<0.000000e+00> : vector<8xf32>
    %23 = vector.multi_reduction <add>, %22, %cst_13 [1] : vector<8x8xf32> to vector<8xf32>
    %24 = vector.shape_cast %23 : vector<8xf32> to vector<8x1xf32>
    %25 = tpu.reciprocal %24 {approx = true} : vector<8x1xf32> -> vector<8x1xf32>
    %26 = vector.broadcast %25 : vector<8x1xf32> to vector<8x8xf32>
    %27 = arith.mulf %22, %26 : vector<8x8xf32>
    %28 = arith.truncf %27 : vector<8x8xf32> to vector<8x8xbf16>
    %c0_14 = arith.constant 0 : index
    %c0_15 = arith.constant 0 : index
    %c0_16 = arith.constant 0 : index
    %c0_17 = arith.constant 0 : index
    %29 = vector.load %arg13[%c0_14, %c0_15, %c0_16, %c0_17] : memref<1x4x8x8xbf16, #tpu.memory_space<vmem>>, vector<1x1x8x8xbf16>
    %30 = vector.shape_cast %29 : vector<1x1x8x8xbf16> to vector<8x8xbf16>
    %31 = vector.shape_cast %28 : vector<8x8xbf16> to vector<1x1x8x8xbf16>
    tpu.vector_store %arg13[%c0_14, %c0_15, %c0_16, %c0_17], %31 {strides = array<i32>} : memref<1x4x8x8xbf16, #tpu.memory_space<vmem>>, vector<1x1x8x8xbf16>,
    %cst_18 = arith.constant dense<0.000000e+00> : vector<8x8xf32>
    %32 = tpu.matmul %28, %16, %cst_18 {dimension_numbers = #tpu.dot_dimension_numbers<[1], [0], [0], [1], [0, 0, 1, 1], [], []>} : vector<8x8xbf16>, vector<8x8xbf16>, vector<8x8xf32> -> vector<8x8xf32>
    %33 = arith.truncf %32 : vector<8x8xf32> to vector<8x8xbf16>
    %c0_19 = arith.constant 0 : index
    %c0_20 = arith.constant 0 : index
    %34 = vector.load %arg16[%c0_19, %c0_20] : memref<8x32xbf16, #tpu.memory_space<vmem>>, vector<8x8xbf16>
    tpu.vector_store %arg16[%c0_19, %c0_20], %33 {strides = array<i32>} : memref<8x32xbf16, #tpu.memory_space<vmem>>, vector<8x8xbf16>,
    %35 = vector.extract_strided_slice %11 {offsets = [0, 8], sizes = [8, 8], strides = [1, 1]} : vector<8x32xbf16> to vector<8x8xbf16>
    %36 = vector.extract_strided_slice %12 {offsets = [0, 8], sizes = [8, 8], strides = [1, 1]} : vector<8x32xbf16> to vector<8x8xbf16>
    %37 = vector.extract_strided_slice %13 {offsets = [0, 8], sizes = [8, 8], strides = [1, 1]} : vector<8x32xbf16> to vector<8x8xbf16>
    %cst_21 = arith.constant dense<0.000000e+00> : vector<8x8xf32>
    %38 = tpu.matmul %35, %36, %cst_21 {dimension_numbers = #tpu.dot_dimension_numbers<[1], [1], [0], [0], [0, 0, 1, 0], [], []>} : vector<8x8xbf16>, vector<8x8xbf16>, vector<8x8xf32> -> vector<8x8xf32>
    %cst_22 = arith.constant dense<0xFF800000> : vector<8xf32>
    %39 = vector.multi_reduction <maximumf>, %38, %cst_22 [1] : vector<8x8xf32> to vector<8xf32>
    %40 = vector.shape_cast %39 : vector<8xf32> to vector<8x1xf32>
    %41 = vector.broadcast %40 : vector<8x1xf32> to vector<8x8xf32>
    %42 = arith.subf %38, %41 : vector<8x8xf32>
    %43 = math.exp %42 : vector<8x8xf32>
    %cst_23 = arith.constant dense<0.000000e+00> : vector<8xf32>
    %44 = vector.multi_reduction <add>, %43, %cst_23 [1] : vector<8x8xf32> to vector<8xf32>
    %45 = vector.shape_cast %44 : vector<8xf32> to vector<8x1xf32>
    %46 = tpu.reciprocal %45 {approx = true} : vector<8x1xf32> -> vector<8x1xf32>
    %47 = vector.broadcast %46 : vector<8x1xf32> to vector<8x8xf32>
    %48 = arith.mulf %43, %47 : vector<8x8xf32>
    %49 = arith.truncf %48 : vector<8x8xf32> to vector<8x8xbf16>
    %c0_24 = arith.constant 0 : index
    %c1 = arith.constant 1 : index
    %c0_25 = arith.constant 0 : index
    %c0_26 = arith.constant 0 : index
    %50 = vector.load %arg13[%c0_24, %c1, %c0_25, %c0_26] : memref<1x4x8x8xbf16, #tpu.memory_space<vmem>>, vector<1x1x8x8xbf16>
    %51 = vector.shape_cast %50 : vector<1x1x8x8xbf16> to vector<8x8xbf16>
    %52 = vector.shape_cast %49 : vector<8x8xbf16> to vector<1x1x8x8xbf16>
    tpu.vector_store %arg13[%c0_24, %c1, %c0_25, %c0_26], %52 {strides = array<i32>} : memref<1x4x8x8xbf16, #tpu.memory_space<vmem>>, vector<1x1x8x8xbf16>,
    %cst_27 = arith.constant dense<0.000000e+00> : vector<8x8xf32>
    %53 = tpu.matmul %49, %37, %cst_27 {dimension_numbers = #tpu.dot_dimension_numbers<[1], [0], [0], [1], [0, 0, 1, 1], [], []>} : vector<8x8xbf16>, vector<8x8xbf16>, vector<8x8xf32> -> vector<8x8xf32>
    %54 = arith.truncf %53 : vector<8x8xf32> to vector<8x8xbf16>
    %c0_28 = arith.constant 0 : index
    %c8 = arith.constant 8 : index
    %55 = vector.load %arg16[%c0_28, %c8] : memref<8x32xbf16, #tpu.memory_space<vmem>>, vector<8x8xbf16>
    tpu.vector_store %arg16[%c0_28, %c8], %54 {strides = array<i32>} : memref<8x32xbf16, #tpu.memory_space<vmem>>, vector<8x8xbf16>,
    %56 = vector.extract_strided_slice %11 {offsets = [0, 16], sizes = [8, 8], strides = [1, 1]} : vector<8x32xbf16> to vector<8x8xbf16>
    %57 = vector.extract_strided_slice %12 {offsets = [0, 16], sizes = [8, 8], strides = [1, 1]} : vector<8x32xbf16> to vector<8x8xbf16>
    %58 = vector.extract_strided_slice %13 {offsets = [0, 16], sizes = [8, 8], strides = [1, 1]} : vector<8x32xbf16> to vector<8x8xbf16>
    %cst_29 = arith.constant dense<0.000000e+00> : vector<8x8xf32>
    %59 = tpu.matmul %56, %57, %cst_29 {dimension_numbers = #tpu.dot_dimension_numbers<[1], [1], [0], [0], [0, 0, 1, 0], [], []>} : vector<8x8xbf16>, vector<8x8xbf16>, vector<8x8xf32> -> vector<8x8xf32>
    %cst_30 = arith.constant dense<0xFF800000> : vector<8xf32>
    %60 = vector.multi_reduction <maximumf>, %59, %cst_30 [1] : vector<8x8xf32> to vector<8xf32>
    %61 = vector.shape_cast %60 : vector<8xf32> to vector<8x1xf32>
    %62 = vector.broadcast %61 : vector<8x1xf32> to vector<8x8xf32>
    %63 = arith.subf %59, %62 : vector<8x8xf32>
    %64 = math.exp %63 : vector<8x8xf32>
    %cst_31 = arith.constant dense<0.000000e+00> : vector<8xf32>
    %65 = vector.multi_reduction <add>, %64, %cst_31 [1] : vector<8x8xf32> to vector<8xf32>
    %66 = vector.shape_cast %65 : vector<8xf32> to vector<8x1xf32>
    %67 = tpu.reciprocal %66 {approx = true} : vector<8x1xf32> -> vector<8x1xf32>
    %68 = vector.broadcast %67 : vector<8x1xf32> to vector<8x8xf32>
    %69 = arith.mulf %64, %68 : vector<8x8xf32>
    %70 = arith.truncf %69 : vector<8x8xf32> to vector<8x8xbf16>
    %c0_32 = arith.constant 0 : index
    %c2 = arith.constant 2 : index
    %c0_33 = arith.constant 0 : index
    %c0_34 = arith.constant 0 : index
    %71 = vector.load %arg13[%c0_32, %c2, %c0_33, %c0_34] : memref<1x4x8x8xbf16, #tpu.memory_space<vmem>>, vector<1x1x8x8xbf16>
    %72 = vector.shape_cast %71 : vector<1x1x8x8xbf16> to vector<8x8xbf16>
    %73 = vector.shape_cast %70 : vector<8x8xbf16> to vector<1x1x8x8xbf16>
    tpu.vector_store %arg13[%c0_32, %c2, %c0_33, %c0_34], %73 {strides = array<i32>} : memref<1x4x8x8xbf16, #tpu.memory_space<vmem>>, vector<1x1x8x8xbf16>,
    %cst_35 = arith.constant dense<0.000000e+00> : vector<8x8xf32>
    %74 = tpu.matmul %70, %58, %cst_35 {dimension_numbers = #tpu.dot_dimension_numbers<[1], [0], [0], [1], [0, 0, 1, 1], [], []>} : vector<8x8xbf16>, vector<8x8xbf16>, vector<8x8xf32> -> vector<8x8xf32>
    %75 = arith.truncf %74 : vector<8x8xf32> to vector<8x8xbf16>
    %c0_36 = arith.constant 0 : index
    %c16 = arith.constant 16 : index
    %76 = vector.load %arg16[%c0_36, %c16] : memref<8x32xbf16, #tpu.memory_space<vmem>>, vector<8x8xbf16>
    tpu.vector_store %arg16[%c0_36, %c16], %75 {strides = array<i32>} : memref<8x32xbf16, #tpu.memory_space<vmem>>, vector<8x8xbf16>,
    %77 = vector.extract_strided_slice %11 {offsets = [0, 24], sizes = [8, 8], strides = [1, 1]} : vector<8x32xbf16> to vector<8x8xbf16>
    %78 = vector.extract_strided_slice %12 {offsets = [0, 24], sizes = [8, 8], strides = [1, 1]} : vector<8x32xbf16> to vector<8x8xbf16>
    %79 = vector.extract_strided_slice %13 {offsets = [0, 24], sizes = [8, 8], strides = [1, 1]} : vector<8x32xbf16> to vector<8x8xbf16>
    %cst_37 = arith.constant dense<0.000000e+00> : vector<8x8xf32>
    %80 = tpu.matmul %77, %78, %cst_37 {dimension_numbers = #tpu.dot_dimension_numbers<[1], [1], [0], [0], [0, 0, 1, 0], [], []>} : vector<8x8xbf16>, vector<8x8xbf16>, vector<8x8xf32> -> vector<8x8xf32>
    %cst_38 = arith.constant dense<0xFF800000> : vector<8xf32>
    %81 = vector.multi_reduction <maximumf>, %80, %cst_38 [1] : vector<8x8xf32> to vector<8xf32>
    %82 = vector.shape_cast %81 : vector<8xf32> to vector<8x1xf32>
    %83 = vector.broadcast %82 : vector<8x1xf32> to vector<8x8xf32>
    %84 = arith.subf %80, %83 : vector<8x8xf32>
    %85 = math.exp %84 : vector<8x8xf32>
    %cst_39 = arith.constant dense<0.000000e+00> : vector<8xf32>
    %86 = vector.multi_reduction <add>, %85, %cst_39 [1] : vector<8x8xf32> to vector<8xf32>
    %87 = vector.shape_cast %86 : vector<8xf32> to vector<8x1xf32>
    %88 = tpu.reciprocal %87 {approx = true} : vector<8x1xf32> -> vector<8x1xf32>
    %89 = vector.broadcast %88 : vector<8x1xf32> to vector<8x8xf32>
    %90 = arith.mulf %85, %89 : vector<8x8xf32>
    %91 = arith.truncf %90 : vector<8x8xf32> to vector<8x8xbf16>
    %c0_40 = arith.constant 0 : index
    %c3 = arith.constant 3 : index
    %c0_41 = arith.constant 0 : index
    %c0_42 = arith.constant 0 : index
    %92 = vector.load %arg13[%c0_40, %c3, %c0_41, %c0_42] : memref<1x4x8x8xbf16, #tpu.memory_space<vmem>>, vector<1x1x8x8xbf16>
    %93 = vector.shape_cast %92 : vector<1x1x8x8xbf16> to vector<8x8xbf16>
    %94 = vector.shape_cast %91 : vector<8x8xbf16> to vector<1x1x8x8xbf16>
    tpu.vector_store %arg13[%c0_40, %c3, %c0_41, %c0_42], %94 {strides = array<i32>} : memref<1x4x8x8xbf16, #tpu.memory_space<vmem>>, vector<1x1x8x8xbf16>,
    %cst_43 = arith.constant dense<0.000000e+00> : vector<8x8xf32>
    %95 = tpu.matmul %91, %79, %cst_43 {dimension_numbers = #tpu.dot_dimension_numbers<[1], [0], [0], [1], [0, 0, 1, 1], [], []>} : vector<8x8xbf16>, vector<8x8xbf16>, vector<8x8xf32> -> vector<8x8xf32>
    %96 = arith.truncf %95 : vector<8x8xf32> to vector<8x8xbf16>
    %c0_44 = arith.constant 0 : index
    %c24 = arith.constant 24 : index
    %97 = vector.load %arg16[%c0_44, %c24] : memref<8x32xbf16, #tpu.memory_space<vmem>>, vector<8x8xbf16>
    tpu.vector_store %arg16[%c0_44, %c24], %96 {strides = array<i32>} : memref<8x32xbf16, #tpu.memory_space<vmem>>, vector<8x8xbf16>,
    %c0_45 = arith.constant 0 : index
    %c0_46 = arith.constant 0 : index
    %98 = vector.load %arg16[%c0_45, %c0_46] : memref<8x32xbf16, #tpu.memory_space<vmem>>, vector<8x32xbf16>
    %c0_47 = arith.constant 0 : index
    %c0_48 = arith.constant 0 : index
    %99 = vector.load %arg8[%c0_47, %c0_48] : memref<32x32xbf16, #tpu.memory_space<vmem>>, vector<32x32xbf16>
    %cst_49 = arith.constant dense<0.000000e+00> : vector<8x32xf32>
    %100 = tpu.matmul %98, %99, %cst_49 {dimension_numbers = #tpu.dot_dimension_numbers<[1], [0], [0], [1], [0, 0, 1, 1], [], []>} : vector<8x32xbf16>, vector<32x32xbf16>, vector<8x32xf32> -> vector<8x32xf32>
    %c0_50 = arith.constant 0 : index
    %c0_51 = arith.constant 0 : index
    %101 = vector.load %arg9[%c0_50, %c0_51] : memref<1x32xf32, #tpu.memory_space<vmem>>, vector<1x32xf32>
    %102 = vector.broadcast %101 : vector<1x32xf32> to vector<8x32xf32>
    %103 = arith.addf %100, %102 : vector<8x32xf32>
    %104 = arith.addf %103, %1 : vector<8x32xf32>
    %cst_52 = arith.constant dense<0.000000e+00> : vector<8xf32>
    %105 = vector.multi_reduction <add>, %104, %cst_52 [1] : vector<8x32xf32> to vector<8xf32>
    %106 = vector.shape_cast %105 : vector<8xf32> to vector<8x1xf32>
    %107 = arith.mulf %104, %104 : vector<8x32xf32>
    %cst_53 = arith.constant dense<0.000000e+00> : vector<8xf32>
    %108 = vector.multi_reduction <add>, %107, %cst_53 [1] : vector<8x32xf32> to vector<8xf32>
    %109 = vector.shape_cast %108 : vector<8xf32> to vector<8x1xf32>
    %cst_54 = arith.constant 3.125000e-02 : f32
    %110 = vector.broadcast %cst_54 : f32 to vector<8x1xf32>
    %111 = arith.mulf %106, %110 : vector<8x1xf32>
    %cst_55 = arith.constant 3.125000e-02 : f32
    %112 = vector.broadcast %cst_55 : f32 to vector<8x1xf32>
    %113 = arith.mulf %109, %112 : vector<8x1xf32>
    %114 = arith.mulf %111, %111 : vector<8x1xf32>
    %115 = arith.subf %113, %114 : vector<8x1xf32>
    %cst_56 = arith.constant 0.000000e+00 : f32
    %116 = vector.broadcast %cst_56 : f32 to vector<8x1xf32>
    %117 = arith.maximumf %115, %116 : vector<8x1xf32>
    %118 = vector.broadcast %111 : vector<8x1xf32> to vector<8x32xf32>
    %119 = arith.subf %104, %118 : vector<8x32xf32>
    %cst_57 = arith.constant 9.99999996E-13 : f32
    %120 = vector.broadcast %cst_57 : f32 to vector<8x1xf32>
    %121 = arith.addf %117, %120 : vector<8x1xf32>
    %122 = math.rsqrt %121 : vector<8x1xf32>
    %123 = vector.broadcast %122 : vector<8x1xf32> to vector<8x32xf32>
    %124 = arith.mulf %119, %123 : vector<8x32xf32>
    %c0_58 = arith.constant 0 : index
    %c0_59 = arith.constant 0 : index
    %125 = vector.load %arg10[%c0_58, %c0_59] : memref<1x32xf32, #tpu.memory_space<vmem>>, vector<1x32xf32>
    %126 = vector.broadcast %125 : vector<1x32xf32> to vector<8x32xf32>
    %127 = arith.mulf %126, %124 : vector<8x32xf32>
    %c0_60 = arith.constant 0 : index
    %c0_61 = arith.constant 0 : index
    %128 = vector.load %arg11[%c0_60, %c0_61] : memref<1x32xf32, #tpu.memory_space<vmem>>, vector<1x32xf32>
    %129 = vector.broadcast %128 : vector<1x32xf32> to vector<8x32xf32>
    %130 = arith.addf %127, %129 : vector<8x32xf32>
    %c0_62 = arith.constant 0 : index
    %c0_63 = arith.constant 0 : index
    %c0_64 = arith.constant 0 : index
    %131 = vector.load %arg12[%c0_62, %c0_63, %c0_64] : memref<1x8x32xf32, #tpu.memory_space<vmem>>, vector<1x8x32xf32>
    %132 = vector.shape_cast %131 : vector<1x8x32xf32> to vector<8x32xf32>
    %133 = vector.shape_cast %130 : vector<8x32xf32> to vector<1x8x32xf32>
    tpu.vector_store %arg12[%c0_62, %c0_63, %c0_64], %133 {strides = array<i32>} : memref<1x8x32xf32, #tpu.memory_space<vmem>>, vector<1x8x32xf32>,
    return
  }
  func.func @transform_0(%arg0: i32, %arg1: i32) -> (i32, i32, i32) {
    %c0_i32 = arith.constant 0 : i32
    %c0_i32_0 = arith.constant 0 : i32
    return %arg0, %arg1, %c0_i32 : i32, i32, i32
  }
  func.func @transform_1(%arg0: i32, %arg1: i32) -> (i32, i32, i32) {
    %c0_i32 = arith.constant 0 : i32
    %c0_i32_0 = arith.constant 0 : i32
    %c0_i32_1 = arith.constant 0 : i32
    return %arg0, %c0_i32, %c0_i32_0 : i32, i32, i32
  }
  func.func @transform_2(%arg0: i32, %arg1: i32) -> (i32, i32) {
    %c0_i32 = arith.constant 0 : i32
    %c0_i32_0 = arith.constant 0 : i32
    %c0_i32_1 = arith.constant 0 : i32
    return %c0_i32, %c0_i32_0 : i32, i32
  }
  func.func @transform_3(%arg0: i32, %arg1: i32) -> (i32, i32) {
    %c0_i32 = arith.constant 0 : i32
    %c0_i32_0 = arith.constant 0 : i32
    %c0_i32_1 = arith.constant 0 : i32
    return %c0_i32, %c0_i32_0 : i32, i32
  }
  func.func @transform_4(%arg0: i32, %arg1: i32) -> (i32, i32) {
    %c0_i32 = arith.constant 0 : i32
    %c0_i32_0 = arith.constant 0 : i32
    %c0_i32_1 = arith.constant 0 : i32
    return %c0_i32, %c0_i32_0 : i32, i32
  }
  func.func @transform_5(%arg0: i32, %arg1: i32) -> (i32, i32) {
    %c0_i32 = arith.constant 0 : i32
    %c0_i32_0 = arith.constant 0 : i32
    %c0_i32_1 = arith.constant 0 : i32
    return %c0_i32, %c0_i32_0 : i32, i32
  }
  func.func @transform_6(%arg0: i32, %arg1: i32) -> (i32, i32) {
    %c0_i32 = arith.constant 0 : i32
    %c0_i32_0 = arith.constant 0 : i32
    %c0_i32_1 = arith.constant 0 : i32
    return %c0_i32, %c0_i32_0 : i32, i32
  }
  func.func @transform_7(%arg0: i32, %arg1: i32) -> (i32, i32) {
    %c0_i32 = arith.constant 0 : i32
    %c0_i32_0 = arith.constant 0 : i32
    %c0_i32_1 = arith.constant 0 : i32
    return %c0_i32, %c0_i32_0 : i32, i32
  }
  func.func @transform_8(%arg0: i32, %arg1: i32) -> (i32, i32) {
    %c0_i32 = arith.constant 0 : i32
    %c0_i32_0 = arith.constant 0 : i32
    %c0_i32_1 = arith.constant 0 : i32
    return %c0_i32, %c0_i32_0 : i32, i32
  }
  func.func @transform_9(%arg0: i32, %arg1: i32) -> (i32, i32) {
    %c0_i32 = arith.constant 0 : i32
    %c0_i32_0 = arith.constant 0 : i32
    %c0_i32_1 = arith.constant 0 : i32
    return %c0_i32, %c0_i32_0 : i32, i32
  }
  func.func @transform_10(%arg0: i32, %arg1: i32) -> (i32, i32, i32) {
    %c0_i32 = arith.constant 0 : i32
    %c0_i32_0 = arith.constant 0 : i32
    return %arg0, %arg1, %c0_i32 : i32, i32, i32
  }
  func.func @transform_11(%arg0: i32, %arg1: i32) -> (i32, i32, i32, i32) {
    %c0_i32 = arith.constant 0 : i32
    %c0_i32_0 = arith.constant 0 : i32
    %c0_i32_1 = arith.constant 0 : i32
    return %arg0, %c0_i32, %arg1, %c0_i32_0 : i32, i32, i32, i32
  }
}

</mosaic_0001>

<llo_original>
// kernel: tpu_custom_call.1
$region0: #{tpu_custom_call.1}
  #allocation0 [shape = 'u32[]', space=smem, size = 0x4, offset = 0x4, fixed_abs, tag = 'smem constant byte address 0x4 - core index']
  #allocation1 [shape = 'u32[144,128]{1,0:T(1,128)}', space=vmem, size = 0x12000, scoped, tag = 'internal scratch']
  #allocation2 [shape = 'bf16[8,32]{1,0:T(8,128)(2,1)}', space=vmem, size = 0x800, scoped, tag = 'scratch operand']
  #allocation3 [shape = 'bf16[8,32]{1,0:T(8,128)(2,1)}', space=vmem, size = 0x800, scoped, tag = 'scratch operand']
  #allocation4 [shape = 'bf16[8,32]{1,0:T(8,128)(2,1)}', space=vmem, size = 0x800, scoped, tag = 'scratch operand']
  %s0 = inlined_call_operand.hbm [shape: f32[2,8,32], index: 0, kind: input, shape index: {}]
  %s1 = inlined_call_operand.hbm [shape: bf16[2,8,32], index: 1, kind: input, shape index: {}]
  %s2 = inlined_call_operand.hbm [shape: bf16[32,32], index: 2, kind: input, shape index: {}]
  %s3 = inlined_call_operand.vmem [shape: f32[1,32], index: 3, kind: input, shape index: {}]
  %s4 = inlined_call_operand.hbm [shape: bf16[32,64], index: 4, kind: input, shape index: {}]
  %s5 = inlined_call_operand.vmem [shape: f32[1,64], index: 5, kind: input, shape index: {}]
  %s6 = inlined_call_operand.vmem [shape: bf16[32,32], index: 6, kind: input, shape index: {}]
  %s7 = inlined_call_operand.vmem [shape: f32[1,32], index: 7, kind: input, shape index: {}]
  %s8 = inlined_call_operand.vmem [shape: f32[1,32], index: 8, kind: input, shape index: {}]
  %s9 = inlined_call_operand.vmem [shape: f32[1,32], index: 9, kind: input, shape index: {}]
  %s10 = inlined_call_operand.hbm [shape: f32[2,8,32], index: 10, kind: output, shape index: {0}]
  %s11 = inlined_call_operand.hbm [shape: bf16[2,4,8,8], index: 11, kind: output, shape index: {1}]
  %12 = xla_tuple %s10, %s11
  %s13 = sld [smem:[#allocation0]]
  $region101: #{tpu_custom_call.1} parent=0
    _
  %s15 = ssub.s32 1, %s13
  %s16 = scalar_select 0, %s15, %s13
  $region1: #{tpu_custom_call.1} parent=0
    #allocation5 [shape = 'u8[8192]{0}', space=vmem, size = 0x2000, scoped, tag = 'input window, operand 0']
    #allocation6 [shape = 's32[2]{0}', space=sflag, size = 0x8, scoped, tag = 'scoped memory for tpu_custom_call.1']
    #allocation7 [shape = 's32[2]{0}', space=sflag, size = 0x8, scoped, tag = 'scoped memory for tpu_custom_call.1']
    #allocation8 [shape = 'u8[4096]{0}', space=vmem, size = 0x1000, scoped, tag = 'input window, operand 1']
    #allocation9 [shape = 's32[2]{0}', space=sflag, size = 0x8, scoped, tag = 'scoped memory for tpu_custom_call.1']
    #allocation10 [shape = 'u8[8192]{0}', space=vmem, size = 0x2000, scoped, tag = 'input window, operand 2, single buffered']
    #allocation11 [shape = 'u8[8192]{0}', space=vmem, size = 0x2000, scoped, tag = 'input window, operand 4, single buffered']
    #allocation12 [shape = 's32[1]{0}', space=sflag, size = 0x4, scoped, tag = 'scoped memory for tpu_custom_call.1']
    #allocation13 [shape = 'u8[8192]{0}', space=vmem, size = 0x2000, scoped, tag = 'output window, operand 0']
    #allocation14 [shape = 'u8[16384]{0}', space=vmem, size = 0x4000, scoped, tag = 'output window, operand 1']
    #allocation15 [shape = 's32[2]{0}', space=sflag, size = 0x8, scoped, tag = 'scoped memory for tpu_custom_call.1']
    %17 = vsyncpa [#allocation6], 0
    %s18 = scalar_lea.sflag [#allocation6], 1
    %19 = vsyncpa %s18, 0
    %20 = vsyncpa [#allocation9], 0
    %s21 = scalar_lea.sflag [#allocation9], 1
    %22 = vsyncpa %s21, 0
    %23 = vsyncpa [#allocation12], 0
    %24 = vsyncpa [#allocation7], 0
    %s25 = scalar_lea.sflag [#allocation7], 1
    %26 = vsyncpa %s25, 0
    %27 = vsyncpa [#allocation15], 0
    %s28 = scalar_lea.sflag [#allocation15], 1
    %29 = vsyncpa %s28, 0
    loop: start=0, step=1, limit=4
    $region2: #{tpu_custom_call.1} parent=1 // loop_pre_header
      _
    $region3: #{tpu_custom_call.1} parent=1 // loop_header
      %s31 = sphi 0, %s35
      %p32 = scmp.ge.s32.totalorder %s31, 4
      %s38 = sphi 0, %s50
      %s39 = sphi 0, %s46
      %s40 = sphi 0, %s38
      %s41 = sphi 0, %s39
      %s42 = sphi 0, %s40
      %s43 = sphi 0, %s41
      %s55 = sphi 0, %s57
      %s58 = sphi 0, %s55
      %s59 = sphi 0, %s58
      %s75 = sphi 0, %s59
      %s81 = sphi 0, %s83
      %s84 = sphi 0, %s81
      %s85 = sphi 0, %s84
      %s101 = sphi 0, %s85
      %s105 = sphi 0, %s105
      %s107 = sphi 0, %s105
      %s108 = sphi 0, %s107
      %s122 = sphi 0, %s108
      %s126 = sphi 0, %s126
      %s128 = sphi 0, %s126
      %s129 = sphi 0, %s128
      %s143 = sphi 0, %s129
      %s147 = sphi 0, %s147
      %s149 = sphi 0, %s147
      %s150 = sphi 0, %s149
      %s164 = sphi 0, %s150
      %s168 = sphi 0, %s168
      %s170 = sphi 0, %s168
      %s171 = sphi 0, %s170
      %s185 = sphi 0, %s171
      %s189 = sphi 0, %s189
      %s191 = sphi 0, %s189
      %s192 = sphi 0, %s191
      %s206 = sphi 0, %s192
      %s210 = sphi 0, %s210
      %s212 = sphi 0, %s210
      %s213 = sphi 0, %s212
      %s227 = sphi 0, %s213
      %s231 = sphi 0, %s231
      %s233 = sphi 0, %s231
      %s234 = sphi 0, %s233
      %s248 = sphi 0, %s234
      %s252 = sphi 0, %s252
      %s254 = sphi 0, %s252
      %s255 = sphi 0, %s254
      %s269 = sphi 0, %s255
      %s277 = sphi 0, %s279
      %s280 = sphi 0, %s277
      %s281 = sphi 0, %s280
      %s297 = sphi 0, %s281
      %s305 = sphi 0, %s307
      %s308 = sphi 0, %s305
      %s309 = sphi 0, %s308
      %s325 = sphi 0, %s309
    $region4: #{tpu_custom_call.1} parent=1 // loop_header_branch
      %34 = sbr.rel (%p32) target = $region8
    $region5: #{tpu_custom_call.1} parent=1 // loop_body
      %s36 = ssub.s32 %s31, 1
      %s37 = ssub.s32 %s31, 2
      %s44 = sadd.s32 1, %s39
      %p45 = scmp.ge.s32.totalorder %s44, 1
      %s46 = scalar_select %p45, 0, %s44
      %s47 = sadd.s32 1, %s38
      %s48 = scalar_select %p45, %s47, %s38
      %p49 = scmp.ge.s32.totalorder %s48, 2
      %s50 = scalar_select %p49, 0, %s48
      %s51 = ssub.s32 %s38, %s50
      %s52 = ssub.s32 %s39, %s46
      %s53 = sor.u32 %s51, %s52
      %p54 = scmp.eq.s32.totalorder %s53, 0
      %s56 = sadd.s32 %s55, 1
      %s57 = scalar_select %p54, %s55, %s56
      %p60 = pneg %p54
      %p61 = scmp.eq.s32.totalorder %s31, 1
      %p62 = por %p60, %p61
      %p63 = scmp.ne.s32.totalorder %s55, %s58
      %p64 = scmp.eq.s32.totalorder %s31, 0
      %p65 = por %p63, %p64
      %p66 = scmp.ne.s32.totalorder %s55, %s58
      %p67 = scmp.eq.s32.totalorder %s36, 1
      %p68 = por %p66, %p67
      %p69 = scmp.ne.s32.totalorder %s58, %s59
      %p70 = scmp.eq.s32.totalorder %s36, 0
      %p71 = por %p69, %p70
      %p72 = scmp.ne.s32.totalorder %s58, %s59
      %p73 = scmp.eq.s32.totalorder %s37, 1
      %p74 = por %p72, %p73
      %p76 = scmp.ne.s32.totalorder %s59, %s75
      %p77 = scmp.eq.s32.totalorder %s37, 0
      %p78 = por %p76, %p77
      %s79 = ssub.s32 %s38, %s50
      %p80 = scmp.eq.s32.totalorder %s79, 0
      %s82 = sadd.s32 %s81, 1
      %s83 = scalar_select %p80, %s81, %s82
      %p86 = pneg %p80
      %p87 = scmp.eq.s32.totalorder %s31, 1
      %p88 = por %p86, %p87
      %p89 = scmp.ne.s32.totalorder %s81, %s84
      %p90 = scmp.eq.s32.totalorder %s31, 0
      %p91 = por %p89, %p90
      %p92 = scmp.ne.s32.totalorder %s81, %s84
      %p93 = scmp.eq.s32.totalorder %s36, 1
      %p94 = por %p92, %p93
      %p95 = scmp.ne.s32.totalorder %s84, %s85
      %p96 = scmp.eq.s32.totalorder %s36, 0
      %p97 = por %p95, %p96
      %p98 = scmp.ne.s32.totalorder %s84, %s85
      %p99 = scmp.eq.s32.totalorder %s37, 1
      %p100 = por %p98, %p99
      %p102 = scmp.ne.s32.totalorder %s85, %s101
      %p103 = scmp.eq.s32.totalorder %s37, 0
      %p104 = por %p102, %p103
      %s106 = sadd.s32 %s105, 1
      %p109 = scmp.eq.s32.totalorder %s31, 1
      %p110 = scmp.ne.s32.totalorder %s105, %s107
      %p111 = scmp.eq.s32.totalorder %s31, 0
      %p112 = por %p110, %p111
      %p113 = scmp.ne.s32.totalorder %s105, %s107
      %p114 = scmp.eq.s32.totalorder %s36, 1
      %p115 = por %p113, %p114
      %p116 = scmp.ne.s32.totalorder %s107, %s108
      %p117 = scmp.eq.s32.totalorder %s36, 0
      %p118 = por %p116, %p117
      %p119 = scmp.ne.s32.totalorder %s107, %s108
      %p120 = scmp.eq.s32.totalorder %s37, 1
      %p121 = por %p119, %p120
      %p123 = scmp.ne.s32.totalorder %s108, %s122
      %p124 = scmp.eq.s32.totalorder %s37, 0
      %p125 = por %p123, %p124
      %s127 = sadd.s32 %s126, 1
      %p130 = scmp.eq.s32.totalorder %s31, 1
      %p131 = scmp.ne.s32.totalorder %s126, %s128
      %p132 = scmp.eq.s32.totalorder %s31, 0
      %p133 = por %p131, %p132
      %p134 = scmp.ne.s32.totalorder %s126, %s128
      %p135 = scmp.eq.s32.totalorder %s36, 1
      %p136 = por %p134, %p135
      %p137 = scmp.ne.s32.totalorder %s128, %s129
      %p138 = scmp.eq.s32.totalorder %s36, 0
      %p139 = por %p137, %p138
      %p140 = scmp.ne.s32.totalorder %s128, %s129
      %p141 = scmp.eq.s32.totalorder %s37, 1
      %p142 = por %p140, %p141
      %p144 = scmp.ne.s32.totalorder %s129, %s143
      %p145 = scmp.eq.s32.totalorder %s37, 0
      %p146 = por %p144, %p145
      %s148 = sadd.s32 %s147, 1
      %p151 = scmp.eq.s32.totalorder %s31, 1
      %p152 = scmp.ne.s32.totalorder %s147, %s149
      %p153 = scmp.eq.s32.totalorder %s31, 0
      %p154 = por %p152, %p153
      %p155 = scmp.ne.s32.totalorder %s147, %s149
      %p156 = scmp.eq.s32.totalorder %s36, 1
      %p157 = por %p155, %p156
      %p158 = scmp.ne.s32.totalorder %s149, %s150
      %p159 = scmp.eq.s32.totalorder %s36, 0
      %p160 = por %p158, %p159
      %p161 = scmp.ne.s32.totalorder %s149, %s150
      %p162 = scmp.eq.s32.totalorder %s37, 1
      %p163 = por %p161, %p162
      %p165 = scmp.ne.s32.totalorder %s150, %s164
      %p166 = scmp.eq.s32.totalorder %s37, 0
      %p167 = por %p165, %p166
      %s169 = sadd.s32 %s168, 1
      %p172 = scmp.eq.s32.totalorder %s31, 1
      %p173 = scmp.ne.s32.totalorder %s168, %s170
      %p174 = scmp.eq.s32.totalorder %s31, 0
      %p175 = por %p173, %p174
      %p176 = scmp.ne.s32.totalorder %s168, %s170
      %p177 = scmp.eq.s32.totalorder %s36, 1
      %p178 = por %p176, %p177
      %p179 = scmp.ne.s32.totalorder %s170, %s171
      %p180 = scmp.eq.s32.totalorder %s36, 0
      %p181 = por %p179, %p180
      %p182 = scmp.ne.s32.totalorder %s170, %s171
      %p183 = scmp.eq.s32.totalorder %s37, 1
      %p184 = por %p182, %p183
      %p186 = scmp.ne.s32.totalorder %s171, %s185
      %p187 = scmp.eq.s32.totalorder %s37, 0
      %p188 = por %p186, %p187
      %s190 = sadd.s32 %s189, 1
      %p193 = scmp.eq.s32.totalorder %s31, 1
      %p194 = scmp.ne.s32.totalorder %s189, %s191
      %p195 = scmp.eq.s32.totalorder %s31, 0
      %p196 = por %p194, %p195
      %p197 = scmp.ne.s32.totalorder %s189, %s191
      %p198 = scmp.eq.s32.totalorder %s36, 1
      %p199 = por %p197, %p198
      %p200 = scmp.ne.s32.totalorder %s191, %s192
      %p201 = scmp.eq.s32.totalorder %s36, 0
      %p202 = por %p200, %p201
      %p203 = scmp.ne.s32.totalorder %s191, %s192
      %p204 = scmp.eq.s32.totalorder %s37, 1
      %p205 = por %p203, %p204
      %p207 = scmp.ne.s32.totalorder %s192, %s206
      %p208 = scmp.eq.s32.totalorder %s37, 0
      %p209 = por %p207, %p208
      %s211 = sadd.s32 %s210, 1
      %p214 = scmp.eq.s32.totalorder %s31, 1
      %p215 = scmp.ne.s32.totalorder %s210, %s212
      %p216 = scmp.eq.s32.totalorder %s31, 0
      %p217 = por %p215, %p216
      %p218 = scmp.ne.s32.totalorder %s210, %s212
      %p219 = scmp.eq.s32.totalorder %s36, 1
      %p220 = por %p218, %p219
      %p221 = scmp.ne.s32.totalorder %s212, %s213
      %p222 = scmp.eq.s32.totalorder %s36, 0
      %p223 = por %p221, %p222
      %p224 = scmp.ne.s32.totalorder %s212, %s213
      %p225 = scmp.eq.s32.totalorder %s37, 1
      %p226 = por %p224, %p225
      %p228 = scmp.ne.s32.totalorder %s213, %s227
      %p229 = scmp.eq.s32.totalorder %s37, 0
      %p230 = por %p228, %p229
      %s232 = sadd.s32 %s231, 1
      %p235 = scmp.eq.s32.totalorder %s31, 1
      %p236 = scmp.ne.s32.totalorder %s231, %s233
      %p237 = scmp.eq.s32.totalorder %s31, 0
      %p238 = por %p236, %p237
      %p239 = scmp.ne.s32.totalorder %s231, %s233
      %p240 = scmp.eq.s32.totalorder %s36, 1
      %p241 = por %p239, %p240
      %p242 = scmp.ne.s32.totalorder %s233, %s234
      %p243 = scmp.eq.s32.totalorder %s36, 0
      %p244 = por %p242, %p243
      %p245 = scmp.ne.s32.totalorder %s233, %s234
      %p246 = scmp.eq.s32.totalorder %s37, 1
      %p247 = por %p245, %p246
      %p249 = scmp.ne.s32.totalorder %s234, %s248
      %p250 = scmp.eq.s32.totalorder %s37, 0
      %p251 = por %p249, %p250
      %s253 = sadd.s32 %s252, 1
      %p256 = scmp.eq.s32.totalorder %s31, 1
      %p257 = scmp.ne.s32.totalorder %s252, %s254
      %p258 = scmp.eq.s32.totalorder %s31, 0
      %p259 = por %p257, %p258
      %p260 = scmp.ne.s32.totalorder %s252, %s254
      %p261 = scmp.eq.s32.totalorder %s36, 1
      %p262 = por %p260, %p261
      %p263 = scmp.ne.s32.totalorder %s254, %s255
      %p264 = scmp.eq.s32.totalorder %s36, 0
      %p265 = por %p263, %p264
      %p266 = scmp.ne.s32.totalorder %s254, %s255
      %p267 = scmp.eq.s32.totalorder %s37, 1
      %p268 = por %p266, %p267
      %p270 = scmp.ne.s32.totalorder %s255, %s269
      %p271 = scmp.eq.s32.totalorder %s37, 0
      %p272 = por %p270, %p271
      %s273 = ssub.s32 %s38, %s50
      %s274 = ssub.s32 %s39, %s46
      %s275 = sor.u32 %s273, %s274
      %p276 = scmp.eq.s32.totalorder %s275, 0
      %s278 = sadd.s32 %s277, 1
      %s279 = scalar_select %p276, %s277, %s278
      %p282 = pneg %p276
      %p283 = scmp.eq.s32.totalorder %s31, 1
      %p284 = por %p282, %p283
      %p285 = scmp.ne.s32.totalorder %s277, %s280
      %p286 = scmp.eq.s32.totalorder %s31, 0
      %p287 = por %p285, %p286
      %p288 = scmp.ne.s32.totalorder %s277, %s280
      %p289 = scmp.eq.s32.totalorder %s36, 1
      %p290 = por %p288, %p289
      %p291 = scmp.ne.s32.totalorder %s280, %s281
      %p292 = scmp.eq.s32.totalorder %s36, 0
      %p293 = por %p291, %p292
      %p294 = scmp.ne.s32.totalorder %s280, %s281
      %p295 = scmp.eq.s32.totalorder %s37, 1
      %p296 = por %p294, %p295
      %p298 = scmp.ne.s32.totalorder %s281, %s297
      %p299 = scmp.eq.s32.totalorder %s37, 0
      %p300 = por %p298, %p299
      %s301 = ssub.s32 %s38, %s50
      %s302 = ssub.s32 %s39, %s46
      %s303 = sor.u32 %s301, %s302
      %p304 = scmp.eq.s32.totalorder %s303, 0
      %s306 = sadd.s32 %s305, 1
      %s307 = scalar_select %p304, %s305, %s306
      %p310 = pneg %p304
      %p311 = scmp.eq.s32.totalorder %s31, 1
      %p312 = por %p310, %p311
      %p313 = scmp.ne.s32.totalorder %s305, %s308
      %p314 = scmp.eq.s32.totalorder %s31, 0
      %p315 = por %p313, %p314
      %p316 = scmp.ne.s32.totalorder %s305, %s308
      %p317 = scmp.eq.s32.totalorder %s36, 1
      %p318 = por %p316, %p317
      %p319 = scmp.ne.s32.totalorder %s308, %s309
      %p320 = scmp.eq.s32.totalorder %s36, 0
      %p321 = por %p319, %p320
      %p322 = scmp.ne.s32.totalorder %s308, %s309
      %p323 = scmp.eq.s32.totalorder %s37, 1
      %p324 = por %p322, %p323
      %p326 = scmp.ne.s32.totalorder %s309, %s325
      %p327 = scmp.eq.s32.totalorder %s37, 0
      %p328 = por %p326, %p327
      %p329 = scmp.le.s32.totalorder 1, %s31
      %p330 = scmp.lt.s32.totalorder %s31, 3
      %p331 = pnand %p329, %p330
      %p332 = pneg %p331
      // Predicated region
      $region9: #{tpu_custom_call.1} parent=5 // pred_check
        _
      $region10: #{tpu_custom_call.1} parent=5 // pred_check_branch
        %334 = sbr.rel (%p331) target = $region12
      $region11: #{tpu_custom_call.1} parent=5 // pred_region
        %s335 = ssub.s32 %s31, 1
        // Predicated region
        $region13: #{tpu_custom_call.1} parent=11 // pred_check
          %p336 = pneg %p118
        $region14: #{tpu_custom_call.1} parent=11 // pred_check_branch
          %338 = sbr.rel (%p336) target = $region16
        $region15: #{tpu_custom_call.1} parent=11 // pred_region
          %s340 = ssub.s32 256, 256
          %341 = vsyncadd [#allocation9], %s340
          %s342 = sshll.u32 [#allocation10], 4
          %s343 = int_to_ptr.vmem [resolvable:$true] %s342
          %348 = dma.hbm_to_vmem [thread:$0]  %s2, 256, %s343, [#allocation9], 64, 64, 4
        $region16: #{tpu_custom_call.1} parent=11 // pred_fallthru
          _
        // Predicated region
        $region17: #{tpu_custom_call.1} parent=11 // pred_check
          %p349 = pneg %p139
        $region18: #{tpu_custom_call.1} parent=11 // pred_check_branch
          %351 = sbr.rel (%p349) target = $region20
        $region19: #{tpu_custom_call.1} parent=11 // pred_region
          _
        $region20: #{tpu_custom_call.1} parent=11 // pred_fallthru
          _
        // Predicated region
        $region21: #{tpu_custom_call.1} parent=11 // pred_check
          %p352 = pneg %p160
        $region22: #{tpu_custom_call.1} parent=11 // pred_check_branch
          %354 = sbr.rel (%p352) target = $region24
        $region23: #{tpu_custom_call.1} parent=11 // pred_region
          %s356 = ssub.s32 256, 256
          %357 = vsyncadd [#allocation12], %s356
          %s358 = sshll.u32 [#allocation11], 4
          %s359 = int_to_ptr.vmem [resolvable:$true] %s358
          %364 = dma.hbm_to_vmem [thread:$0]  %s4, 256, %s359, [#allocation12], 64, 64, 4
        $region24: #{tpu_custom_call.1} parent=11 // pred_fallthru
          _
        // Predicated region
        $region25: #{tpu_custom_call.1} parent=11 // pred_check
          %p365 = pneg %p181
        $region26: #{tpu_custom_call.1} parent=11 // pred_check_branch
          %367 = sbr.rel (%p365) target = $region28
        $region27: #{tpu_custom_call.1} parent=11 // pred_region
          _
        $region28: #{tpu_custom_call.1} parent=11 // pred_fallthru
          _
        // Predicated region
        $region29: #{tpu_custom_call.1} parent=11 // pred_check
          %p368 = pneg %p202
        $region30: #{tpu_custom_call.1} parent=11 // pred_check_branch
          %370 = sbr.rel (%p368) target = $region32
        $region31: #{tpu_custom_call.1} parent=11 // pred_region
          _
        $region32: #{tpu_custom_call.1} parent=11 // pred_fallthru
          _
        // Predicated region
        $region33: #{tpu_custom_call.1} parent=11 // pred_check
          %p371 = pneg %p223
        $region34: #{tpu_custom_call.1} parent=11 // pred_check_branch
          %373 = sbr.rel (%p371) target = $region36
        $region35: #{tpu_custom_call.1} parent=11 // pred_region
          _
        $region36: #{tpu_custom_call.1} parent=11 // pred_fallthru
          _
        // Predicated region
        $region37: #{tpu_custom_call.1} parent=11 // pred_check
          %p374 = pneg %p244
        $region38: #{tpu_custom_call.1} parent=11 // pred_check_branch
          %376 = sbr.rel (%p374) target = $region40
        $region39: #{tpu_custom_call.1} parent=11 // pred_region
          _
        $region40: #{tpu_custom_call.1} parent=11 // pred_fallthru
          _
        // Predicated region
        $region41: #{tpu_custom_call.1} parent=11 // pred_check
          %p377 = pneg %p265
        $region42: #{tpu_custom_call.1} parent=11 // pred_check_branch
          %379 = sbr.rel (%p377) target = $region44
        $region43: #{tpu_custom_call.1} parent=11 // pred_region
          _
        $region44: #{tpu_custom_call.1} parent=11 // pred_fallthru
          _
      $region12: #{tpu_custom_call.1} parent=5 // pred_fallthru
        _
      %p380 = scmp.lt.s32.totalorder %s31, 2
      // Predicated region
      $region45: #{tpu_custom_call.1} parent=5 // pred_check
        %p381 = pneg %p380
      $region46: #{tpu_custom_call.1} parent=5 // pred_check_branch
        %383 = sbr.rel (%p381) target = $region48
      $region47: #{tpu_custom_call.1} parent=5 // pred_region
        // Predicated region
        $region49: #{tpu_custom_call.1} parent=47 // pred_check
          %p384 = pneg %p65
        $region50: #{tpu_custom_call.1} parent=47 // pred_check_branch
          %386 = sbr.rel (%p384) target = $region52
        $region51: #{tpu_custom_call.1} parent=47 // pred_region
          %s387 = sand.u32 %s55, 1
          %s388 = scalar_lea.sflag [#allocation6], %s387
          %s389 = sand.u32 %s55, 1
          %s390 = smul.addr %s389, 8
          %s391 = scalar_lea.vmem [#allocation5], %s390
          %s393 = ssub.s32 128, 128
          %394 = vsyncadd %s388, %s393
          %s395 = sadd.s32 %s39, %s38
          %s396 = smul.addr %s395, 128
          %s397 = scalar_lea.hbm %s0, %s396
          %s399 = sshll.u32 %s391, 4
          %s400 = int_to_ptr.vmem [resolvable:$true] %s399
          %402 = dma.hbm_to_vmem [thread:$0]  %s397, 128, %s400, %s388
        $region52: #{tpu_custom_call.1} parent=47 // pred_fallthru
          _
        // Predicated region
        $region53: #{tpu_custom_call.1} parent=47 // pred_check
          %p403 = pneg %p91
        $region54: #{tpu_custom_call.1} parent=47 // pred_check_branch
          %405 = sbr.rel (%p403) target = $region56
        $region55: #{tpu_custom_call.1} parent=47 // pred_region
          %s406 = sand.u32 %s31, 1
          %s407 = scalar_lea.sflag [#allocation9], %s406
          %s408 = sand.u32 %s81, 1
          %s409 = smul.addr %s408, 4
          %s410 = scalar_lea.vmem [#allocation8], %s409
          %s412 = ssub.s32 64, 64
          %413 = vsyncadd %s407, %s412
          %s414 = smul.addr %s38, 64
          %s415 = scalar_lea.hbm %s1, %s414
          %s417 = sshll.u32 %s410, 4
          %s418 = int_to_ptr.vmem [resolvable:$true] %s417
          %420 = dma.hbm_to_vmem [thread:$0]  %s415, 64, %s418, %s407
        $region56: #{tpu_custom_call.1} parent=47 // pred_fallthru
          _
      $region48: #{tpu_custom_call.1} parent=5 // pred_fallthru
        _
      %p421 = scmp.le.s32.totalorder 1, %s31
      %p422 = scmp.lt.s32.totalorder %s31, 3
      %p423 = pnand %p421, %p422
      %p424 = pneg %p423
      // Predicated region
      $region57: #{tpu_custom_call.1} parent=5 // pred_check
        _
      $region58: #{tpu_custom_call.1} parent=5 // pred_check_branch
        %426 = sbr.rel (%p423) target = $region60
      $region59: #{tpu_custom_call.1} parent=5 // pred_region
        %s427 = ssub.s32 %s31, 1
        %s428 = sand.u32 %s58, 1
        %s429 = scalar_lea.sflag [#allocation6], %s428
        %s430 = sand.u32 %s58, 1
        %s431 = smul.addr %s430, 8
        %s432 = scalar_lea.vmem [#allocation5], %s431
        // Predicated region
        $region61: #{tpu_custom_call.1} parent=59 // pred_check
          %p433 = pneg %p71
        $region62: #{tpu_custom_call.1} parent=59 // pred_check_branch
          %435 = sbr.rel (%p433) target = $region64
        $region63: #{tpu_custom_call.1} parent=59 // pred_region
          %436 = dma.done %s429, 128
        $region64: #{tpu_custom_call.1} parent=59 // pred_fallthru
          _
        %s437 = sand.u32 %s36, 1
        %s438 = scalar_lea.sflag [#allocation9], %s437
        %s439 = sand.u32 %s84, 1
        %s440 = smul.addr %s439, 4
        %s441 = scalar_lea.vmem [#allocation8], %s440
        // Predicated region
        $region65: #{tpu_custom_call.1} parent=59 // pred_check
          %p442 = pneg %p97
        $region66: #{tpu_custom_call.1} parent=59 // pred_check_branch
          %444 = sbr.rel (%p442) target = $region68
        $region67: #{tpu_custom_call.1} parent=59 // pred_region
          %445 = dma.done %s438, 64
        $region68: #{tpu_custom_call.1} parent=59 // pred_fallthru
          _
        // Predicated region
        $region69: #{tpu_custom_call.1} parent=59 // pred_check
          %p446 = pneg %p118
        $region70: #{tpu_custom_call.1} parent=59 // pred_check_branch
          %448 = sbr.rel (%p446) target = $region72
        $region71: #{tpu_custom_call.1} parent=59 // pred_region
          %449 = dma.done [#allocation9], 256
        $region72: #{tpu_custom_call.1} parent=59 // pred_fallthru
          _
        // Predicated region
        $region73: #{tpu_custom_call.1} parent=59 // pred_check
          %p450 = pneg %p160
        $region74: #{tpu_custom_call.1} parent=59 // pred_check_branch
          %452 = sbr.rel (%p450) target = $region76
        $region75: #{tpu_custom_call.1} parent=59 // pred_region
          %453 = dma.done [#allocation12], 256
        $region76: #{tpu_custom_call.1} parent=59 // pred_fallthru
          _
        %s454 = sand.u32 %s58, 1
        %s455 = scalar_lea.sflag [#allocation6], %s454
        %s456 = sand.u32 %s58, 1
        %s457 = smul.addr %s456, 8
        %s458 = scalar_lea.vmem [#allocation5], %s457
        %p459 = pneg %p71
        %p460 = pneg %p68
        %s461 = sand.u32 %s36, 1
        %s462 = scalar_lea.sflag [#allocation9], %s461
        %s463 = sand.u32 %s84, 1
        %s464 = smul.addr %s463, 4
        %s465 = scalar_lea.vmem [#allocation8], %s464
        %p466 = pneg %p97
        %p467 = pneg %p94
        %p468 = pneg %p118
        %p469 = pneg %p115
        %p470 = pneg %p139
        %p471 = pneg %p136
        %p472 = pneg %p160
        %p473 = pneg %p157
        %p474 = pneg %p181
        %p475 = pneg %p178
        %p476 = pneg %p202
        %p477 = pneg %p199
        %p478 = pneg %p223
        %p479 = pneg %p220
        %p480 = pneg %p244
        %p481 = pneg %p241
        %p482 = pneg %p265
        %p483 = pneg %p262
        %p484 = pneg %p293
        %p485 = pneg %p290
        %s486 = sand.u32 %s280, 1
        %s487 = scalar_lea.sflag [#allocation7], %s486
        %s488 = sand.u32 %s280, 1
        %s489 = smul.addr %s488, 8
        %s490 = scalar_lea.vmem [#allocation13], %s489
        %p491 = pneg %p321
        %p492 = pneg %p318
        %s493 = sand.u32 %s308, 1
        %s494 = scalar_lea.sflag [#allocation15], %s493
        %s495 = sand.u32 %s308, 1
        %s496 = smul.addr %s495, 16
        %s497 = scalar_lea.vmem [#allocation14], %s496
        %v499 = vld [vmem:[%s432] sm:$0xff]
        %v500 = vpack.c.bf16 %v499, %v499
        %p501 = scmp.eq.s32.totalorder %s41, 0
        // Predicated region
        $region77: #{tpu_custom_call.1} parent=59 // pred_check
          %p502 = pneg %p501
        $region78: #{tpu_custom_call.1} parent=59 // pred_check_branch
          %504 = sbr.rel (%p502) target = $region80
        $region79: #{tpu_custom_call.1} parent=59 // pred_region
          %v505 = vld [vmem:[%s441] sm:$0xf]
          %v506 = vld [vmem:[#allocation11] sm:$0xf]
          %v507 = vld [vmem:[#allocation11 + $0x4] sm:$0xf]
          %v508 = vld [vmem:[#allocation11 + $0x8] sm:$0xf]
          %v509 = vld [vmem:[#allocation11 + $0xc] sm:$0xf]
          %v510 = vld [vmem:[%s5] sm:$0x1]
          %v512 = vlaneseq
          %v513 = vshrl.u32 %v512, 7
          %v514 = vsub.s32 0, %v513
          %v515 = vrot.slane %v510, %v514
          %v521 = vunpack.c.l.b16 %v506
          %v522 = vunpack.c.l.b16 %v507
          %v523 = vunpack.c.l.b16 %v508
          %v524 = vunpack.c.l.b16 %v509
          %v525 = vpack.c.b16 %v522, %v521
          %v526 = vpack.c.b16 %v524, %v523
          %vm529 = vcmask 261120
          %v531 = vsel %vm529, %v505, 0
          %533 = vmatprep.subr.bf16.mxu0 0
          %534 = vmatpush1.bf16.msra.mxu0 %v525
          %535 = vmatprep.subr.bf16.mxu0 0
          %536 = vmatpush1.bf16.msra.mxu0 %v526
          %537 = vmatprep.subr.bf16.mxu0 0
          %538 = vmatpush1.bf16.msra.mxu0 0
          %539 = vmatprep.subr.bf16.mxu0 0
          %540 = vmatpush1.bf16.msra.mxu0 0
          %541 = vmatprep.subr.bf16.mxu0 0
          %542 = vmatpush1.bf16.msra.mxu0 0
          %543 = vmatprep.subr.bf16.mxu0 0
          %544 = vmatpush1.bf16.msra.mxu0 0
          %545 = vmatprep.subr.bf16.mxu0 0
          %546 = vmatpush1.bf16.msra.mxu0 0
          %547 = vmatprep.subr.bf16.mxu0 0
          %548 = vmatpush1.bf16.msra.mxu0 0
          %549 = vmatprep.subr.bf16.mxu0 0
          %550 = vmatpush1.bf16.msra.mxu0 0
          %551 = vmatprep.subr.bf16.mxu0 0
          %552 = vmatpush1.bf16.msra.mxu0 0
          %553 = vmatprep.subr.bf16.mxu0 0
          %554 = vmatpush1.bf16.msra.mxu0 0
          %555 = vmatprep.subr.bf16.mxu0 0
          %556 = vmatpush1.bf16.msra.mxu0 0
          %557 = vmatprep.subr.bf16.mxu0 0
          %558 = vmatpush1.bf16.msra.mxu0 0
          %559 = vmatprep.subr.bf16.mxu0 0
          %560 = vmatpush1.bf16.msra.mxu0 0
          %561 = vmatprep.subr.bf16.mxu0 0
          %562 = vmatpush1.bf16.msra.mxu0 0
          %563 = vmatprep.subr.bf16.mxu0 0
          %564 = vmatpush1.bf16.msra.mxu0 0
          %565 = vmatprep.mubr.bf16.mxu0 0
          %566 = vmatmul.mubr.bf16.gmra.mrb[0].mxu0 %v531
          %v567 = vpop.f32.mrb[0].mxu0
          %v568 = vadd.f32 %v515, %v567
          %v569 = vpop.f32.mrb[0].mxu0
          %v570 = vpop.f32.mrb[0].mxu0
          %v571 = vpop.f32.mrb[0].mxu0
          %572 = vdwg.mxu0
          %v573 = vpack.c.bf16 %v568, %v568
          %vm574 = vcmask 257024
          %575 = vst.msk [vmem:[#allocation2] sm:$0xf] %vm574, %v573
          %v577 = vunpack.c.l.b16 %v573
          %v578 = vpack.c.b16 %v577, %v577
          %579 = vrot.lane.b32.xlu0 %v578, 96
          %v580 = vpop.permute.xlu0 %579
          %582 = vst.msk [vmem:[#allocation3] sm:$0xf] %vm574, %v580
        $region80: #{tpu_custom_call.1} parent=59 // pred_fallthru
          _
        %v583 = vld [vmem:[#allocation10] sm:$0xf]
        %v584 = vld [vmem:[#allocation10 + $0x4] sm:$0xf]
        %v585 = vld [vmem:[#allocation10 + $0x8] sm:$0xf]
        %v586 = vld [vmem:[#allocation10 + $0xc] sm:$0xf]
        %v587 = vld [vmem:[%s3] sm:$0x1]
        %v589 = vlaneseq
        %v590 = vshrl.u32 %v589, 7
        %v591 = vsub.s32 0, %v590
        %v592 = vrot.slane %v587, %v591
        %v598 = vunpack.c.l.b16 %v583
        %v599 = vunpack.c.l.b16 %v584
        %v600 = vunpack.c.l.b16 %v585
        %v601 = vunpack.c.l.b16 %v586
        %v602 = vpack.c.b16 %v599, %v598
        %v603 = vpack.c.b16 %v601, %v600
        %vm606 = vcmask 261120
        %v608 = vsel %vm606, %v500, 0
        %610 = vmatprep.subr.bf16.mxu0 0
        %611 = vmatpush1.bf16.msra.mxu0 %v602
        %612 = vmatprep.subr.bf16.mxu0 0
        %613 = vmatpush1.bf16.msra.mxu0 %v603
        %614 = vmatprep.subr.bf16.mxu0 0
        %615 = vmatpush1.bf16.msra.mxu0 0
        %616 = vmatprep.subr.bf16.mxu0 0
        %617 = vmatpush1.bf16.msra.mxu0 0
        %618 = vmatprep.subr.bf16.mxu0 0
        %619 = vmatpush1.bf16.msra.mxu0 0
        %620 = vmatprep.subr.bf16.mxu0 0
        %621 = vmatpush1.bf16.msra.mxu0 0
        %622 = vmatprep.subr.bf16.mxu0 0
        %623 = vmatpush1.bf16.msra.mxu0 0
        %624 = vmatprep.subr.bf16.mxu0 0
        %625 = vmatpush1.bf16.msra.mxu0 0
        %626 = vmatprep.subr.bf16.mxu0 0
        %627 = vmatpush1.bf16.msra.mxu0 0
        %628 = vmatprep.subr.bf16.mxu0 0
        %629 = vmatpush1.bf16.msra.mxu0 0
        %630 = vmatprep.subr.bf16.mxu0 0
        %631 = vmatpush1.bf16.msra.mxu0 0
        %632 = vmatprep.subr.bf16.mxu0 0
        %633 = vmatpush1.bf16.msra.mxu0 0
        %634 = vmatprep.subr.bf16.mxu0 0
        %635 = vmatpush1.bf16.msra.mxu0 0
        %636 = vmatprep.subr.bf16.mxu0 0
        %637 = vmatpush1.bf16.msra.mxu0 0
        %638 = vmatprep.subr.bf16.mxu0 0
        %639 = vmatpush1.bf16.msra.mxu0 0
        %640 = vmatprep.subr.bf16.mxu0 0
        %641 = vmatpush1.bf16.msra.mxu0 0
        %642 = vmatprep.mubr.bf16.mxu0 0
        %643 = vmatmul.mubr.bf16.gmra.mrb[0].mxu0 %v608
        %v644 = vpop.f32.mrb[0].mxu0
        %v645 = vadd.f32 %v592, %v644
        %v646 = vpop.f32.mrb[0].mxu0
        %v647 = vpop.f32.mrb[0].mxu0
        %v648 = vpop.f32.mrb[0].mxu0
        %649 = vdwg.mxu0
        %v650 = vpack.c.bf16 %v645, %v645
        %v651 = vld [vmem:[#allocation2] sm:$0xf]
        %v652 = vld [vmem:[#allocation3] sm:$0xf]
        %vm653 = vcmask 64512
        %v655 = vsel %vm653, %v650, 0
        %v658 = vsel %vm653, %v651, 0
        %660 = vmatprep.subr.bf16.mxu0 0
        %661 = vmatpush1.bf16.xpose.msra.mxu0 %v658
        %662 = vmatprep.subr.bf16.mxu0 0
        %663 = vmatpush1.bf16.xpose.msra.mxu0 0
        %664 = vmatprep.subr.bf16.mxu0 0
        %665 = vmatpush1.bf16.xpose.msra.mxu0 0
        %666 = vmatprep.subr.bf16.mxu0 0
        %667 = vmatpush1.bf16.xpose.msra.mxu0 0
        %668 = vmatprep.subr.bf16.mxu0 0
        %669 = vmatpush1.bf16.xpose.msra.mxu0 0
        %670 = vmatprep.subr.bf16.mxu0 0
        %671 = vmatpush1.bf16.xpose.msra.mxu0 0
        %672 = vmatprep.subr.bf16.mxu0 0
        %673 = vmatpush1.bf16.xpose.msra.mxu0 0
        %674 = vmatprep.subr.bf16.mxu0 0
        %675 = vmatpush1.bf16.xpose.msra.mxu0 0
        %676 = vmatprep.subr.bf16.mxu0 0
        %677 = vmatpush1.bf16.xpose.msra.mxu0 0
        %678 = vmatprep.subr.bf16.mxu0 0
        %679 = vmatpush1.bf16.xpose.msra.mxu0 0
        %680 = vmatprep.subr.bf16.mxu0 0
        %681 = vmatpush1.bf16.xpose.msra.mxu0 0
        %682 = vmatprep.subr.bf16.mxu0 0
        %683 = vmatpush1.bf16.xpose.msra.mxu0 0
        %684 = vmatprep.subr.bf16.mxu0 0
        %685 = vmatpush1.bf16.xpose.msra.mxu0 0
        %686 = vmatprep.subr.bf16.mxu0 0
        %687 = vmatpush1.bf16.xpose.msra.mxu0 0
        %688 = vmatprep.subr.bf16.mxu0 0
        %689 = vmatpush1.bf16.xpose.msra.mxu0 0
        %690 = vmatprep.subr.bf16.mxu0 0
        %691 = vmatpush1.bf16.xpose.msra.mxu0 0
        %692 = vmatprep.mubr.bf16.mxu0 0
        %693 = vmatmul.mubr.bf16.gmra.mrb[0].mxu0 %v655
        %v694 = vpop.f32.mrb[0].mxu0
        %v695 = vadd.f32 0.0, %v694
        %v696 = vpop.f32.mrb[0].mxu0
        %v697 = vpop.f32.mrb[0].mxu0
        %v698 = vpop.f32.mrb[0].mxu0
        %699 = vdwg.mxu0
        %v700 = vsel %vm653, %v695, -inf
        %701 = vmax.xlane.f32.xlu0 %v700
        %v702 = vpop.xlane.xlu0 %701
        %v703 = vsub.f32 %v695, %v702
        %v704 = vmul.f32 %v703, 1.442695
        %v705 = vpow.pop %v704
        %v706 = vsel %vm653, %v705, 0.0
        %707 = vadd.xlane.f32.xlu0 %v706
        %v708 = vpop.xlane.xlu0 %707
        %v709 = vrcp.pop %v708
        %v710 = vmul.f32 %v705, %v709
        %v711 = vpack.c.bf16 %v710, %v710
        %vm712 = vcmask 60416
        %713 = vst.msk [vmem:[%s497] sm:$0xf] %vm712, %v711
        %v715 = vsel %vm653, %v711, 0
        %vm717 = vcmask 1043456
        %v719 = vsel %vm717, %v652, 0
        %721 = vmatprep.subr.bf16.mxu0 0
        %722 = vmatpush1.bf16.msra.mxu0 %v719
        %723 = vmatprep.subr.bf16.mxu0 0
        %724 = vmatpush1.bf16.msra.mxu0 0
        %725 = vmatprep.subr.bf16.mxu0 0
        %726 = vmatpush1.bf16.msra.mxu0 0
        %727 = vmatprep.subr.bf16.mxu0 0
        %728 = vmatpush1.bf16.msra.mxu0 0
        %729 = vmatprep.subr.bf16.mxu0 0
        %730 = vmatpush1.bf16.msra.mxu0 0
        %731 = vmatprep.subr.bf16.mxu0 0
        %732 = vmatpush1.bf16.msra.mxu0 0
        %733 = vmatprep.subr.bf16.mxu0 0
        %734 = vmatpush1.bf16.msra.mxu0 0
        %735 = vmatprep.subr.bf16.mxu0 0
        %736 = vmatpush1.bf16.msra.mxu0 0
        %737 = vmatprep.subr.bf16.mxu0 0
        %738 = vmatpush1.bf16.msra.mxu0 0
        %739 = vmatprep.subr.bf16.mxu0 0
        %740 = vmatpush1.bf16.msra.mxu0 0
        %741 = vmatprep.subr.bf16.mxu0 0
        %742 = vmatpush1.bf16.msra.mxu0 0
        %743 = vmatprep.subr.bf16.mxu0 0
        %744 = vmatpush1.bf16.msra.mxu0 0
        %745 = vmatprep.subr.bf16.mxu0 0
        %746 = vmatpush1.bf16.msra.mxu0 0
        %747 = vmatprep.subr.bf16.mxu0 0
        %748 = vmatpush1.bf16.msra.mxu0 0
        %749 = vmatprep.subr.bf16.mxu0 0
        %750 = vmatpush1.bf16.msra.mxu0 0
        %751 = vmatprep.subr.bf16.mxu0 0
        %752 = vmatpush1.bf16.msra.mxu0 0
        %753 = vmatprep.mubr.bf16.mxu0 0
        %754 = vmatmul.mubr.bf16.gmra.mrb[0].mxu0 %v715
        %v755 = vpop.f32.mrb[0].mxu0
        %v756 = vadd.f32 0.0, %v755
        %v757 = vpop.f32.mrb[0].mxu0
        %v758 = vpop.f32.mrb[0].mxu0
        %v759 = vpop.f32.mrb[0].mxu0
        %760 = vdwg.mxu0
        %v761 = vpack.c.bf16 %v756, %v756
        %762 = vst.msk [vmem:[#allocation4] sm:$0xf] %vm712, %v761
        %764 = vrot.lane.b32.xlu0 %v650, 120
        %v765 = vpop.permute.xlu0 %764
        %v767 = vunpack.c.l.b16 %v651
        %v768 = vpack.c.b16 %v767, %v767
        %769 = vrot.lane.b32.xlu0 %v768, 120
        %v770 = vpop.permute.xlu0 %769
        %v772 = vsel %vm653, %v765, 0
        %v775 = vsel %vm653, %v770, 0
        %777 = vmatprep.subr.bf16.mxu0 0
        %778 = vmatpush1.bf16.xpose.msra.mxu0 %v775
        %779 = vmatprep.subr.bf16.mxu0 0
        %780 = vmatpush1.bf16.xpose.msra.mxu0 0
        %781 = vmatprep.subr.bf16.mxu0 0
        %782 = vmatpush1.bf16.xpose.msra.mxu0 0
        %783 = vmatprep.subr.bf16.mxu0 0
        %784 = vmatpush1.bf16.xpose.msra.mxu0 0
        %785 = vmatprep.subr.bf16.mxu0 0
        %786 = vmatpush1.bf16.xpose.msra.mxu0 0
        %787 = vmatprep.subr.bf16.mxu0 0
        %788 = vmatpush1.bf16.xpose.msra.mxu0 0
        %789 = vmatprep.subr.bf16.mxu0 0
        %790 = vmatpush1.bf16.xpose.msra.mxu0 0
        %791 = vmatprep.subr.bf16.mxu0 0
        %792 = vmatpush1.bf16.xpose.msra.mxu0 0
        %793 = vmatprep.subr.bf16.mxu0 0
        %794 = vmatpush1.bf16.xpose.msra.mxu0 0
        %795 = vmatprep.subr.bf16.mxu0 0
        %796 = vmatpush1.bf16.xpose.msra.mxu0 0
        %797 = vmatprep.subr.bf16.mxu0 0
        %798 = vmatpush1.bf16.xpose.msra.mxu0 0
        %799 = vmatprep.subr.bf16.mxu0 0
        %800 = vmatpush1.bf16.xpose.msra.mxu0 0
        %801 = vmatprep.subr.bf16.mxu0 0
        %802 = vmatpush1.bf16.xpose.msra.mxu0 0
        %803 = vmatprep.subr.bf16.mxu0 0
        %804 = vmatpush1.bf16.xpose.msra.mxu0 0
        %805 = vmatprep.subr.bf16.mxu0 0
        %806 = vmatpush1.bf16.xpose.msra.mxu0 0
        %807 = vmatprep.subr.bf16.mxu0 0
        %808 = vmatpush1.bf16.xpose.msra.mxu0 0
        %809 = vmatprep.mubr.bf16.mxu0 0
        %810 = vmatmul.mubr.bf16.gmra.mrb[0].mxu0 %v772
        %v811 = vpop.f32.mrb[0].mxu0
        %v812 = vadd.f32 0.0, %v811
        %v813 = vpop.f32.mrb[0].mxu0
        %v814 = vpop.f32.mrb[0].mxu0
        %v815 = vpop.f32.mrb[0].mxu0
        %816 = vdwg.mxu0
        %v817 = vsel %vm653, %v812, -inf
        %818 = vmax.xlane.f32.xlu0 %v817
        %v819 = vpop.xlane.xlu0 %818
        %v820 = vsub.f32 %v812, %v819
        %v821 = vmul.f32 %v820, 1.442695
        %v822 = vpow.pop %v821
        %v823 = vsel %vm653, %v822, 0.0
        %824 = vadd.xlane.f32.xlu0 %v823
        %v825 = vpop.xlane.xlu0 %824
        %v826 = vrcp.pop %v825
        %v827 = vmul.f32 %v822, %v826
        %v828 = vpack.c.bf16 %v827, %v827
        %s829 = scalar_lea.vmem %s497, 4 [#allocation14]
        %830 = vst.msk [vmem:[%s829] sm:$0xf] %vm712, %v828
        %v832 = vunpack.c.l.b16 %v652
        %v833 = vpack.c.b16 %v832, %v832
        %834 = vrot.lane.b32.xlu0 %v833, 120
        %v835 = vpop.permute.xlu0 %834
        %v837 = vsel %vm653, %v828, 0
        %v840 = vsel %vm717, %v835, 0
        %842 = vmatprep.subr.bf16.mxu0 0
        %843 = vmatpush1.bf16.msra.mxu0 %v840
        %844 = vmatprep.subr.bf16.mxu0 0
        %845 = vmatpush1.bf16.msra.mxu0 0
        %846 = vmatprep.subr.bf16.mxu0 0
        %847 = vmatpush1.bf16.msra.mxu0 0
        %848 = vmatprep.subr.bf16.mxu0 0
        %849 = vmatpush1.bf16.msra.mxu0 0
        %850 = vmatprep.subr.bf16.mxu0 0
        %851 = vmatpush1.bf16.msra.mxu0 0
        %852 = vmatprep.subr.bf16.mxu0 0
        %853 = vmatpush1.bf16.msra.mxu0 0
        %854 = vmatprep.subr.bf16.mxu0 0
        %855 = vmatpush1.bf16.msra.mxu0 0
        %856 = vmatprep.subr.bf16.mxu0 0
        %857 = vmatpush1.bf16.msra.mxu0 0
        %858 = vmatprep.subr.bf16.mxu0 0
        %859 = vmatpush1.bf16.msra.mxu0 0
        %860 = vmatprep.subr.bf16.mxu0 0
        %861 = vmatpush1.bf16.msra.mxu0 0
        %862 = vmatprep.subr.bf16.mxu0 0
        %863 = vmatpush1.bf16.msra.mxu0 0
        %864 = vmatprep.subr.bf16.mxu0 0
        %865 = vmatpush1.bf16.msra.mxu0 0
        %866 = vmatprep.subr.bf16.mxu0 0
        %867 = vmatpush1.bf16.msra.mxu0 0
        %868 = vmatprep.subr.bf16.mxu0 0
        %869 = vmatpush1.bf16.msra.mxu0 0
        %870 = vmatprep.subr.bf16.mxu0 0
        %871 = vmatpush1.bf16.msra.mxu0 0
        %872 = vmatprep.subr.bf16.mxu0 0
        %873 = vmatpush1.bf16.msra.mxu0 0
        %874 = vmatprep.mubr.bf16.mxu0 0
        %875 = vmatmul.mubr.bf16.gmra.mrb[0].mxu0 %v837
        %v876 = vpop.f32.mrb[0].mxu0
        %v877 = vadd.f32 0.0, %v876
        %v878 = vpop.f32.mrb[0].mxu0
        %v879 = vpop.f32.mrb[0].mxu0
        %v880 = vpop.f32.mrb[0].mxu0
        %881 = vdwg.mxu0
        %v882 = vpack.c.bf16 %v877, %v877
        %v884 = vunpack.c.l.b16 %v882
        %v885 = vpack.c.b16 %v884, %v884
        %886 = vrot.lane.b32.xlu0 %v885, 8
        %v887 = vpop.permute.xlu0 %886
        %vm889 = vcmask 126016
        %890 = vst.msk [vmem:[#allocation4] sm:$0xf] %vm889, %v887
        %891 = vrot.lane.b32.xlu0 %v650, 112
        %v892 = vpop.permute.xlu0 %891
        %893 = vrot.lane.b32.xlu0 %v768, 112
        %v894 = vpop.permute.xlu0 %893
        %v896 = vsel %vm653, %v892, 0
        %v899 = vsel %vm653, %v894, 0
        %901 = vmatprep.subr.bf16.mxu0 0
        %902 = vmatpush1.bf16.xpose.msra.mxu0 %v899
        %903 = vmatprep.subr.bf16.mxu0 0
        %904 = vmatpush1.bf16.xpose.msra.mxu0 0
        %905 = vmatprep.subr.bf16.mxu0 0
        %906 = vmatpush1.bf16.xpose.msra.mxu0 0
        %907 = vmatprep.subr.bf16.mxu0 0
        %908 = vmatpush1.bf16.xpose.msra.mxu0 0
        %909 = vmatprep.subr.bf16.mxu0 0
        %910 = vmatpush1.bf16.xpose.msra.mxu0 0
        %911 = vmatprep.subr.bf16.mxu0 0
        %912 = vmatpush1.bf16.xpose.msra.mxu0 0
        %913 = vmatprep.subr.bf16.mxu0 0
        %914 = vmatpush1.bf16.xpose.msra.mxu0 0
        %915 = vmatprep.subr.bf16.mxu0 0
        %916 = vmatpush1.bf16.xpose.msra.mxu0 0
        %917 = vmatprep.subr.bf16.mxu0 0
        %918 = vmatpush1.bf16.xpose.msra.mxu0 0
        %919 = vmatprep.subr.bf16.mxu0 0
        %920 = vmatpush1.bf16.xpose.msra.mxu0 0
        %921 = vmatprep.subr.bf16.mxu0 0
        %922 = vmatpush1.bf16.xpose.msra.mxu0 0
        %923 = vmatprep.subr.bf16.mxu0 0
        %924 = vmatpush1.bf16.xpose.msra.mxu0 0
        %925 = vmatprep.subr.bf16.mxu0 0
        %926 = vmatpush1.bf16.xpose.msra.mxu0 0
        %927 = vmatprep.subr.bf16.mxu0 0
        %928 = vmatpush1.bf16.xpose.msra.mxu0 0
        %929 = vmatprep.subr.bf16.mxu0 0
        %930 = vmatpush1.bf16.xpose.msra.mxu0 0
        %931 = vmatprep.subr.bf16.mxu0 0
        %932 = vmatpush1.bf16.xpose.msra.mxu0 0
        %933 = vmatprep.mubr.bf16.mxu0 0
        %934 = vmatmul.mubr.bf16.gmra.mrb[0].mxu0 %v896
        %v935 = vpop.f32.mrb[0].mxu0
        %v936 = vadd.f32 0.0, %v935
        %v937 = vpop.f32.mrb[0].mxu0
        %v938 = vpop.f32.mrb[0].mxu0
        %v939 = vpop.f32.mrb[0].mxu0
        %940 = vdwg.mxu0
        %v941 = vsel %vm653, %v936, -inf
        %942 = vmax.xlane.f32.xlu0 %v941
        %v943 = vpop.xlane.xlu0 %942
        %v944 = vsub.f32 %v936, %v943
        %v945 = vmul.f32 %v944, 1.442695
        %v946 = vpow.pop %v945
        %v947 = vsel %vm653, %v946, 0.0
        %948 = vadd.xlane.f32.xlu0 %v947
        %v949 = vpop.xlane.xlu0 %948
        %v950 = vrcp.pop %v949
        %v951 = vmul.f32 %v946, %v950
        %v952 = vpack.c.bf16 %v951, %v951
        %s953 = scalar_lea.vmem %s497, 8 [#allocation14]
        %954 = vst.msk [vmem:[%s953] sm:$0xf] %vm712, %v952
        %955 = vrot.lane.b32.xlu0 %v833, 112
        %v956 = vpop.permute.xlu0 %955
        %v958 = vsel %vm653, %v952, 0
        %v961 = vsel %vm717, %v956, 0
        %963 = vmatprep.subr.bf16.mxu0 0
        %964 = vmatpush1.bf16.msra.mxu0 %v961
        %965 = vmatprep.subr.bf16.mxu0 0
        %966 = vmatpush1.bf16.msra.mxu0 0
        %967 = vmatprep.subr.bf16.mxu0 0
        %968 = vmatpush1.bf16.msra.mxu0 0
        %969 = vmatprep.subr.bf16.mxu0 0
        %970 = vmatpush1.bf16.msra.mxu0 0
        %971 = vmatprep.subr.bf16.mxu0 0
        %972 = vmatpush1.bf16.msra.mxu0 0
        %973 = vmatprep.subr.bf16.mxu0 0
        %974 = vmatpush1.bf16.msra.mxu0 0
        %975 = vmatprep.subr.bf16.mxu0 0
        %976 = vmatpush1.bf16.msra.mxu0 0
        %977 = vmatprep.subr.bf16.mxu0 0
        %978 = vmatpush1.bf16.msra.mxu0 0
        %979 = vmatprep.subr.bf16.mxu0 0
        %980 = vmatpush1.bf16.msra.mxu0 0
        %981 = vmatprep.subr.bf16.mxu0 0
        %982 = vmatpush1.bf16.msra.mxu0 0
        %983 = vmatprep.subr.bf16.mxu0 0
        %984 = vmatpush1.bf16.msra.mxu0 0
        %985 = vmatprep.subr.bf16.mxu0 0
        %986 = vmatpush1.bf16.msra.mxu0 0
        %987 = vmatprep.subr.bf16.mxu0 0
        %988 = vmatpush1.bf16.msra.mxu0 0
        %989 = vmatprep.subr.bf16.mxu0 0
        %990 = vmatpush1.bf16.msra.mxu0 0
        %991 = vmatprep.subr.bf16.mxu0 0
        %992 = vmatpush1.bf16.msra.mxu0 0
        %993 = vmatprep.subr.bf16.mxu0 0
        %994 = vmatpush1.bf16.msra.mxu0 0
        %995 = vmatprep.mubr.bf16.mxu0 0
        %996 = vmatmul.mubr.bf16.gmra.mrb[0].mxu0 %v958
        %v997 = vpop.f32.mrb[0].mxu0
        %v998 = vadd.f32 0.0, %v997
        %v999 = vpop.f32.mrb[0].mxu0
        %v1000 = vpop.f32.mrb[0].mxu0
        %v1001 = vpop.f32.mrb[0].mxu0
        %1002 = vdwg.mxu0
        %v1003 = vpack.c.bf16 %v998, %v998
        %v1005 = vunpack.c.l.b16 %v1003
        %v1006 = vpack.c.b16 %v1005, %v1005
        %1007 = vrot.lane.b32.xlu0 %v1006, 16
        %v1008 = vpop.permute.xlu0 %1007
        %vm1010 = vcmask 191616
        %1011 = vst.msk [vmem:[#allocation4] sm:$0xf] %vm1010, %v1008
        %1012 = vrot.lane.b32.xlu0 %v650, 104
        %v1013 = vpop.permute.xlu0 %1012
        %1014 = vrot.lane.b32.xlu0 %v768, 104
        %v1015 = vpop.permute.xlu0 %1014
        %v1017 = vsel %vm653, %v1013, 0
        %v1020 = vsel %vm653, %v1015, 0
        %1022 = vmatprep.subr.bf16.mxu0 0
        %1023 = vmatpush1.bf16.xpose.msra.mxu0 %v1020
        %1024 = vmatprep.subr.bf16.mxu0 0
        %1025 = vmatpush1.bf16.xpose.msra.mxu0 0
        %1026 = vmatprep.subr.bf16.mxu0 0
        %1027 = vmatpush1.bf16.xpose.msra.mxu0 0
        %1028 = vmatprep.subr.bf16.mxu0 0
        %1029 = vmatpush1.bf16.xpose.msra.mxu0 0
        %1030 = vmatprep.subr.bf16.mxu0 0
        %1031 = vmatpush1.bf16.xpose.msra.mxu0 0
        %1032 = vmatprep.subr.bf16.mxu0 0
        %1033 = vmatpush1.bf16.xpose.msra.mxu0 0
        %1034 = vmatprep.subr.bf16.mxu0 0
        %1035 = vmatpush1.bf16.xpose.msra.mxu0 0
        %1036 = vmatprep.subr.bf16.mxu0 0
        %1037 = vmatpush1.bf16.xpose.msra.mxu0 0
        %1038 = vmatprep.subr.bf16.mxu0 0
        %1039 = vmatpush1.bf16.xpose.msra.mxu0 0
        %1040 = vmatprep.subr.bf16.mxu0 0
        %1041 = vmatpush1.bf16.xpose.msra.mxu0 0
        %1042 = vmatprep.subr.bf16.mxu0 0
        %1043 = vmatpush1.bf16.xpose.msra.mxu0 0
        %1044 = vmatprep.subr.bf16.mxu0 0
        %1045 = vmatpush1.bf16.xpose.msra.mxu0 0
        %1046 = vmatprep.subr.bf16.mxu0 0
        %1047 = vmatpush1.bf16.xpose.msra.mxu0 0
        %1048 = vmatprep.subr.bf16.mxu0 0
        %1049 = vmatpush1.bf16.xpose.msra.mxu0 0
        %1050 = vmatprep.subr.bf16.mxu0 0
        %1051 = vmatpush1.bf16.xpose.msra.mxu0 0
        %1052 = vmatprep.subr.bf16.mxu0 0
        %1053 = vmatpush1.bf16.xpose.msra.mxu0 0
        %1054 = vmatprep.mubr.bf16.mxu0 0
        %1055 = vmatmul.mubr.bf16.gmra.mrb[0].mxu0 %v1017
        %v1056 = vpop.f32.mrb[0].mxu0
        %v1057 = vadd.f32 0.0, %v1056
        %v1058 = vpop.f32.mrb[0].mxu0
        %v1059 = vpop.f32.mrb[0].mxu0
        %v1060 = vpop.f32.mrb[0].mxu0
        %1061 = vdwg.mxu0
        %v1062 = vsel %vm653, %v1057, -inf
        %1063 = vmax.xlane.f32.xlu0 %v1062
        %v1064 = vpop.xlane.xlu0 %1063
        %v1065 = vsub.f32 %v1057, %v1064
        %v1066 = vmul.f32 %v1065, 1.442695
        %v1067 = vpow.pop %v1066
        %v1068 = vsel %vm653, %v1067, 0.0
        %1069 = vadd.xlane.f32.xlu0 %v1068
        %v1070 = vpop.xlane.xlu0 %1069
        %v1071 = vrcp.pop %v1070
        %v1072 = vmul.f32 %v1067, %v1071
        %v1073 = vpack.c.bf16 %v1072, %v1072
        %s1074 = scalar_lea.vmem %s497, 12 [#allocation14]
        %1075 = vst.msk [vmem:[%s1074] sm:$0xf] %vm712, %v1073
        %1076 = vrot.lane.b32.xlu0 %v833, 104
        %v1077 = vpop.permute.xlu0 %1076
        %v1079 = vsel %vm653, %v1073, 0
        %v1082 = vsel %vm717, %v1077, 0
        %1084 = vmatprep.subr.bf16.mxu0 0
        %1085 = vmatpush1.bf16.msra.mxu0 %v1082
        %1086 = vmatprep.subr.bf16.mxu0 0
        %1087 = vmatpush1.bf16.msra.mxu0 0
        %1088 = vmatprep.subr.bf16.mxu0 0
        %1089 = vmatpush1.bf16.msra.mxu0 0
        %1090 = vmatprep.subr.bf16.mxu0 0
        %1091 = vmatpush1.bf16.msra.mxu0 0
        %1092 = vmatprep.subr.bf16.mxu0 0
        %1093 = vmatpush1.bf16.msra.mxu0 0
        %1094 = vmatprep.subr.bf16.mxu0 0
        %1095 = vmatpush1.bf16.msra.mxu0 0
        %1096 = vmatprep.subr.bf16.mxu0 0
        %1097 = vmatpush1.bf16.msra.mxu0 0
        %1098 = vmatprep.subr.bf16.mxu0 0
        %1099 = vmatpush1.bf16.msra.mxu0 0
        %1100 = vmatprep.subr.bf16.mxu0 0
        %1101 = vmatpush1.bf16.msra.mxu0 0
        %1102 = vmatprep.subr.bf16.mxu0 0
        %1103 = vmatpush1.bf16.msra.mxu0 0
        %1104 = vmatprep.subr.bf16.mxu0 0
        %1105 = vmatpush1.bf16.msra.mxu0 0
        %1106 = vmatprep.subr.bf16.mxu0 0
        %1107 = vmatpush1.bf16.msra.mxu0 0
        %1108 = vmatprep.subr.bf16.mxu0 0
        %1109 = vmatpush1.bf16.msra.mxu0 0
        %1110 = vmatprep.subr.bf16.mxu0 0
        %1111 = vmatpush1.bf16.msra.mxu0 0
        %1112 = vmatprep.subr.bf16.mxu0 0
        %1113 = vmatpush1.bf16.msra.mxu0 0
        %1114 = vmatprep.subr.bf16.mxu0 0
        %1115 = vmatpush1.bf16.msra.mxu0 0
        %1116 = vmatprep.mubr.bf16.mxu0 0
        %1117 = vmatmul.mubr.bf16.gmra.mrb[0].mxu0 %v1079
        %v1118 = vpop.f32.mrb[0].mxu0
        %v1119 = vadd.f32 0.0, %v1118
        %v1120 = vpop.f32.mrb[0].mxu0
        %v1121 = vpop.f32.mrb[0].mxu0
        %v1122 = vpop.f32.mrb[0].mxu0
        %1123 = vdwg.mxu0
        %v1124 = vpack.c.bf16 %v1119, %v1119
        %v1126 = vunpack.c.l.b16 %v1124
        %v1127 = vpack.c.b16 %v1126, %v1126
        %1128 = vrot.lane.b32.xlu0 %v1127, 24
        %v1129 = vpop.permute.xlu0 %1128
        %vm1131 = vcmask 257216
        %1132 = vst.msk [vmem:[#allocation4] sm:$0xf] %vm1131, %v1129
        %v1133 = vld [vmem:[#allocation4] sm:$0xf]
        %v1134 = vld [vmem:[%s6] sm:$0xf]
        %v1135 = vld [vmem:[%s6 + $0x4] sm:$0xf]
        %v1136 = vld [vmem:[%s6 + $0x8] sm:$0xf]
        %v1137 = vld [vmem:[%s6 + $0xc] sm:$0xf]
        %v1138 = vld [vmem:[%s7] sm:$0x1]
        %v1140 = vlaneseq
        %v1141 = vshrl.u32 %v1140, 7
        %v1142 = vsub.s32 0, %v1141
        %v1143 = vrot.slane %v1138, %v1142
        %v1149 = vunpack.c.l.b16 %v1134
        %v1150 = vunpack.c.l.b16 %v1135
        %v1151 = vunpack.c.l.b16 %v1136
        %v1152 = vunpack.c.l.b16 %v1137
        %v1153 = vpack.c.b16 %v1150, %v1149
        %v1154 = vpack.c.b16 %v1152, %v1151
        %v1158 = vsel %vm606, %v1133, 0
        %1160 = vmatprep.subr.bf16.mxu0 0
        %1161 = vmatpush1.bf16.msra.mxu0 %v1153
        %1162 = vmatprep.subr.bf16.mxu0 0
        %1163 = vmatpush1.bf16.msra.mxu0 %v1154
        %1164 = vmatprep.subr.bf16.mxu0 0
        %1165 = vmatpush1.bf16.msra.mxu0 0
        %1166 = vmatprep.subr.bf16.mxu0 0
        %1167 = vmatpush1.bf16.msra.mxu0 0
        %1168 = vmatprep.subr.bf16.mxu0 0
        %1169 = vmatpush1.bf16.msra.mxu0 0
        %1170 = vmatprep.subr.bf16.mxu0 0
        %1171 = vmatpush1.bf16.msra.mxu0 0
        %1172 = vmatprep.subr.bf16.mxu0 0
        %1173 = vmatpush1.bf16.msra.mxu0 0
        %1174 = vmatprep.subr.bf16.mxu0 0
        %1175 = vmatpush1.bf16.msra.mxu0 0
        %1176 = vmatprep.subr.bf16.mxu0 0
        %1177 = vmatpush1.bf16.msra.mxu0 0
        %1178 = vmatprep.subr.bf16.mxu0 0
        %1179 = vmatpush1.bf16.msra.mxu0 0
        %1180 = vmatprep.subr.bf16.mxu0 0
        %1181 = vmatpush1.bf16.msra.mxu0 0
        %1182 = vmatprep.subr.bf16.mxu0 0
        %1183 = vmatpush1.bf16.msra.mxu0 0
        %1184 = vmatprep.subr.bf16.mxu0 0
        %1185 = vmatpush1.bf16.msra.mxu0 0
        %1186 = vmatprep.subr.bf16.mxu0 0
        %1187 = vmatpush1.bf16.msra.mxu0 0
        %1188 = vmatprep.subr.bf16.mxu0 0
        %1189 = vmatpush1.bf16.msra.mxu0 0
        %1190 = vmatprep.subr.bf16.mxu0 0
        %1191 = vmatpush1.bf16.msra.mxu0 0
        %1192 = vmatprep.mubr.bf16.mxu0 0
        %1193 = vmatmul.mubr.bf16.gmra.mrb[0].mxu0 %v1158
        %v1194 = vpop.f32.mrb[0].mxu0
        %v1195 = vadd.f32 %v1143, %v1194
        %v1196 = vpop.f32.mrb[0].mxu0
        %v1197 = vpop.f32.mrb[0].mxu0
        %v1198 = vpop.f32.mrb[0].mxu0
        %1199 = vdwg.mxu0
        %v1200 = vadd.f32 %v1195, %v499
        %v1201 = vsel %vm606, %v1200, 0.0
        %1202 = vadd.xlane.f32.xlu0 %v1201
        %v1203 = vpop.xlane.xlu0 %1202
        %v1204 = vmul.f32 %v1200, %v1200
        %v1205 = vsel %vm606, %v1204, 0.0
        %1206 = vadd.xlane.f32.xlu0 %v1205
        %v1207 = vpop.xlane.xlu0 %1206
        %v1208 = vmul.f32 %v1203, 0.03125
        %v1209 = vmul.f32 %v1207, 0.03125
        %v1210 = vmul.f32 %v1208, %v1208
        %v1211 = vsub.f32 %v1209, %v1210
        %v1212 = vmax.f32 %v1211, 0.0
        %v1213 = vsub.f32 %v1200, %v1208
        %v1214 = vadd.f32 %v1212, 1e-12
        %v1215 = vrsqrt.pop %v1214
        %v1216 = vmul.f32 %v1213, %v1215
        %v1217 = vld [vmem:[%s8] sm:$0x1]
        %v1219 = vlaneseq
        %v1220 = vshrl.u32 %v1219, 7
        %v1221 = vsub.s32 0, %v1220
        %v1222 = vrot.slane %v1217, %v1221
        %v1224 = vmul.f32 %v1222, %v1216
        %v1225 = vld [vmem:[%s9] sm:$0x1]
        %v1227 = vlaneseq
        %v1228 = vshrl.u32 %v1227, 7
        %v1229 = vsub.s32 0, %v1228
        %v1230 = vrot.slane %v1225, %v1229
        %v1232 = vadd.f32 %v1224, %v1230
        %1233 = vst.msk [vmem:[%s490] sm:$0xff] %vm606, %v1232
        %s1234 = sand.u32 %s280, 1
        %s1235 = scalar_lea.sflag [#allocation7], %s1234
        %s1236 = sand.u32 %s280, 1
        %s1237 = smul.addr %s1236, 8
        %s1238 = scalar_lea.vmem [#allocation13], %s1237
        %s1239 = sand.u32 %s308, 1
        %s1240 = scalar_lea.sflag [#allocation15], %s1239
        %s1241 = sand.u32 %s308, 1
        %s1242 = smul.addr %s1241, 16
        %s1243 = scalar_lea.vmem [#allocation14], %s1242
        // Predicated region
        $region81: #{tpu_custom_call.1} parent=59 // pred_check
          %p1244 = pneg %p290
        $region82: #{tpu_custom_call.1} parent=59 // pred_check_branch
          %1246 = sbr.rel (%p1244) target = $region84
        $region83: #{tpu_custom_call.1} parent=59 // pred_region
          %s1248 = ssub.s32 128, 128
          %1249 = vsyncadd %s1235, %s1248
          %s1250 = sadd.s32 %s41, %s40
          %s1251 = smul.addr %s1250, 128
          %s1252 = scalar_lea.hbm %s10, %s1251
          %s1254 = sshll.u32 %s1238, 4
          %s1255 = int_to_ptr.vmem [resolvable:$true] %s1254
          %1257 = dma.vmem_to_hbm [thread:$0]  %s1255, 128, %s1252, %s1235
        $region84: #{tpu_custom_call.1} parent=59 // pred_fallthru
          _
        // Predicated region
        $region85: #{tpu_custom_call.1} parent=59 // pred_check
          %p1258 = pneg %p318
        $region86: #{tpu_custom_call.1} parent=59 // pred_check_branch
          %1260 = sbr.rel (%p1258) target = $region88
        $region87: #{tpu_custom_call.1} parent=59 // pred_region
          %s1262 = ssub.s32 256, 256
          %1263 = vsyncadd %s1240, %s1262
          %s1264 = smul.addr %s40, 4
          %s1265 = sadd.s32 %s41, %s1264
          %s1266 = smul.addr %s1265, 64
          %s1267 = scalar_lea.hbm %s11, %s1266
          %s1268 = sshll.u32 %s1243, 4
          %s1269 = int_to_ptr.vmem [resolvable:$true] %s1268
          %1274 = dma.vmem_to_hbm [thread:$0]  %s1269, 256, %s1267, %s1240, 64, 64, 4
        $region88: #{tpu_custom_call.1} parent=59 // pred_fallthru
          _
      $region60: #{tpu_custom_call.1} parent=5 // pred_fallthru
        _
      %p1275 = scmp.le.s32.totalorder 2, %s31
      // Predicated region
      $region89: #{tpu_custom_call.1} parent=5 // pred_check
        %p1276 = pneg %p1275
      $region90: #{tpu_custom_call.1} parent=5 // pred_check_branch
        %1278 = sbr.rel (%p1276) target = $region92
      $region91: #{tpu_custom_call.1} parent=5 // pred_region
        %s1279 = ssub.s32 %s31, 2
        // Predicated region
        $region93: #{tpu_custom_call.1} parent=91 // pred_check
          %p1280 = pneg %p296
        $region94: #{tpu_custom_call.1} parent=91 // pred_check_branch
          %1282 = sbr.rel (%p1280) target = $region96
        $region95: #{tpu_custom_call.1} parent=91 // pred_region
          %s1283 = sand.u32 %s281, 1
          %s1284 = scalar_lea.sflag [#allocation7], %s1283
          %s1285 = sand.u32 %s281, 1
          %s1286 = smul.addr %s1285, 8
          %s1287 = scalar_lea.vmem [#allocation13], %s1286
          %1288 = dma.done %s1284, 128
        $region96: #{tpu_custom_call.1} parent=91 // pred_fallthru
          _
        // Predicated region
        $region97: #{tpu_custom_call.1} parent=91 // pred_check
          %p1289 = pneg %p324
        $region98: #{tpu_custom_call.1} parent=91 // pred_check_branch
          %1291 = sbr.rel (%p1289) target = $region100
        $region99: #{tpu_custom_call.1} parent=91 // pred_region
          %s1292 = sand.u32 %s309, 1
          %s1293 = scalar_lea.sflag [#allocation15], %s1292
          %s1294 = sand.u32 %s309, 1
          %s1295 = smul.addr %s1294, 16
          %s1296 = scalar_lea.vmem [#allocation14], %s1295
          %1297 = dma.done %s1293, 256
        $region100: #{tpu_custom_call.1} parent=91 // pred_fallthru
          _
      $region92: #{tpu_custom_call.1} parent=5 // pred_fallthru
        _
    $region6: #{tpu_custom_call.1} parent=1 // loop_footer
      %s35 = sadd.s32 1, %s31
    $region7: #{tpu_custom_call.1} parent=1 // loop_footer_branch
      %30 = sbr.rel target = $region3
    $region8: #{tpu_custom_call.1} parent=1 // loop_exit
      _
    %1298 = vsyncpa [#allocation6], 1
    %s1299 = scalar_lea.sflag [#allocation6], 1
    %1300 = vsyncpa %s1299, 1
    %1301 = vsyncpa [#allocation9], 1
    %s1302 = scalar_lea.sflag [#allocation9], 1
    %1303 = vsyncpa %s1302, 1
    %1304 = vsyncpa [#allocation12], 1
    %1305 = vsyncpa [#allocation7], 1
    %s1306 = scalar_lea.sflag [#allocation7], 1
    %1307 = vsyncpa %s1306, 1
    %1308 = vsyncpa [#allocation15], 1
    %s1309 = scalar_lea.sflag [#allocation15], 1
    %1310 = vsyncpa %s1309, 1

</llo_original>
